<compile_context>
chip_gen: v6e
topology: v6e:2x2x1
jax: 0.10.0
libtpu: 0.0.40
codegen_flags: <defaults>
</compile_context>

<pallas_src>
import jax
import jax.numpy as jnp
from jax import lax
from jax.experimental import pallas as pl
from jax.experimental.pallas import tpu as pltpu


def _act_a(z):
    return jax.nn.silu(z) + z


def _round_up(v, m):
    return -(-v // m) * m


def _vmem_capacity_bytes():
    try:
        return int(pltpu.get_tpu_info().vmem_capacity_bytes)
    except Exception:
        return 128 * 1024 * 1024


def _bf16_activation_ok():
    # v6e/v7x have bf16 VPU/EUP -> compute trunk activations in bf16 there.
    # v5e (and older) lack it -> keep f32 (bf16 would only add converts).
    try:
        kind = jax.devices()[0].device_kind.lower()
    except Exception:
        return False
    return any(tag in kind for tag in ("v6", "v7", "7x"))


def _make_kernel(hidden_list, dx, act_in_bf16):
    """Kernel refs (in order):
         x_tile, wx_in, bx_in, [wx_l, bx_l]*L, c_cat, bias_bo, o_tile(out), hcat(scratch)
    """
    L = len(hidden_list)

    if act_in_bf16:
        def act(z):                      # z is f32 (matmul accumulation)
            zb = z.astype(jnp.bfloat16)
            return jax.nn.silu(zb) + jnp.sin(zb)          # bf16 activation path
    else:
        def act(z):
            return (jax.nn.silu(z) + jnp.sin(z)).astype(jnp.bfloat16)

    def kernel(*refs):
        x_ref, wx_in_ref, bx_in_ref = refs[0], refs[1], refs[2]
        layer_refs = refs[3:3 + 2 * L]
        c_ref, bias_ref, o_ref, hcat_ref = refs[-4], refs[-3], refs[-2], refs[-1]

        # ---- trunk input projection.  K = dx is tiny, so do it as dx broadcast
        #      FMAs on the VPU instead of wasting an MXU push.
        if dx <= 8:
            z = bx_in_ref[...].astype(jnp.float32)
            for j in range(dx):
                z = z + (x_ref[:, j:j + 1].astype(jnp.float32) *
                         wx_in_ref[j:j + 1, :].astype(jnp.float32))
        else:
            z = jnp.dot(x_ref[...], wx_in_ref[...],
                        preferred_element_type=jnp.float32) + bx_in_ref[...]
        h_bf = act(z)                                      # (tn, h0) bf16

        # ---- trunk hidden layers.  Each layer's activation is written into its
        #      static slice of the concatenated VMEM scratch; the bf16 value is
        #      shared by the next-layer matmul and the scratch store.
        off = 0
        for l in range(L):
            wx_ref, bx_ref = layer_refs[2 * l], layer_refs[2 * l + 1]
            z = jnp.dot(h_bf, wx_ref[...],
                        preferred_element_type=jnp.float32) + bx_ref[...]
            h_bf = act(z)                                  # (tn, h_l) bf16
            hcat_ref[:, off:off + hidden_list[l]] = h_bf
            off += hidden_list[l]

        # ---- single large-K contraction:
        #      out[bo, n] = sum_{l,h} C_cat[bo, lh] * X_cat[n, lh]  (+ fc_out bias).
        acc = lax.dot_general(
            c_ref[...], hcat_ref[...],
            dimension_numbers=(((1,), (1,)), ((), ())),
            preferred_element_type=jnp.float32)            # (BO, tn), f32
        # Store is lane-dense: last dim = mesh tile (multiple of 128 or full).
        o_ref[...] = (acc + bias_ref[...]).astype(o_ref.dtype)

    return kernel


def _const_spec(shape, single_buffer):
    """Full-array block presented to every grid step (constant index_map)."""
    nd = len(shape)
    idx = lambda i: (0,) * nd
    if single_buffer and hasattr(pl, "Buffered"):
        try:
            # Constant-index blocks are fetched once; no need to double-buffer them
            # (halves their resident VMEM footprint -- matters most on v7x).
            return pl.BlockSpec(shape, idx, pipeline_mode=pl.Buffered(1))
        except TypeError:
            pass
    return pl.BlockSpec(shape, idx)


def multionet_forward(x, a_mesh, params, hidden_list, out_size, *, tile_n=None):
    """Forward pass of MultiONetCartesianProd_X.

    x      : (N, dx)        trunk input
    a_mesh : (B, M, da)     branch input (M == latent_size)
    returns: (B, N, out_size)
    """
    N, dx = x.shape
    B, M, da = a_mesh.shape
    L = len(hidden_list)
    BO = B * out_size
    hidden_list = tuple(int(h) for h in hidden_list)
    H_total = int(sum(hidden_list))

    wx_in, bx_in, wa_in, ba_in = params[:4]
    layer_p = params[4:4 + 4 * L]
    w_out, b_out = params[4 + 4 * L:]

    # ---- Branch ("a") network + fc_out/(1/L) folding: O(B*M*h^2*L) flops with no
    #      mesh dependence -> hoisted out of the grid, done once in plain XLA.
    with jax.default_matmul_precision("highest"):
        a = _act_a(a_mesh.reshape(B * M, da) @ wa_in + ba_in)
        c_list = []
        for l in range(L):
            wa, ba = layer_p[4 * l + 2], layer_p[4 * l + 3]
            a = _act_a(a @ wa + ba)                                     # (B*M, h_l)
            c = jnp.einsum('bmh,mo->boh', a.reshape(B, M, -1), w_out) / float(L)
            c_list.append(c.reshape(BO, -1))
    # Concatenate per-layer C along the hidden axis -> one large-K matmul in-kernel.
    c_cat = jnp.concatenate(c_list, axis=1).astype(jnp.bfloat16)        # (BO, H_total)
    bias_bo = jnp.broadcast_to(b_out.reshape(1, out_size),
                               (B, out_size)).reshape(BO, 1).astype(jnp.float32)

    # ---- Generation-aware VMEM budget + mesh tiling.
    vmem_cap = _vmem_capacity_bytes()
    small_vmem = vmem_cap <= 64 * 1024 * 1024                           # v7x
    if tile_n is None:
        tile_n = 512 if small_vmem else 1024
    vmem_limit = (48 if small_vmem else 96) * 1024 * 1024
    vmem_limit = min(vmem_limit, max(vmem_cap - 8 * 1024 * 1024, 16 * 1024 * 1024))

    if N <= 128:
        tn, n_pad = N, N                         # single full-array tile
    else:
        tile_req = max(128, (int(tile_n) // 128) * 128)
        # >=2 lane-aligned tiles whenever the mesh allows it, so the "parallel"
        # grid axis can shard across both v7x TensorCores.
        tn = min(tile_req, 128 * max(1, N // 256))
        n_pad = _round_up(N, tn)
    n_tiles = n_pad // tn

    x_pad = x if n_pad == N else jnp.pad(x, ((0, n_pad - N), (0, 0)))
    x_pad = x_pad.astype(jnp.bfloat16)           # halves the only streamed input DMA

    act_in_bf16 = _bf16_activation_ok()
    kernel = _make_kernel(hidden_list, dx, act_in_bf16)

    # ---- Kernel arguments (trunk weights in bf16: halves weight DMA / VMEM).
    const_args = [wx_in.astype(jnp.bfloat16), bx_in.astype(jnp.float32)]
    for l in range(L):
        wx, bx = layer_p[4 * l], layer_p[4 * l + 1]
        const_args += [wx.astype(jnp.bfloat16), bx.astype(jnp.float32)]
    const_args += [c_cat, bias_bo]
    kernel_args = [x_pad] + const_args

    # ---- Advisory cost estimate for XLA's scheduler.
    h0 = hidden_list[0]
    flops_row = dx * h0
    h_prev = h0
    for h in hidden_list:
        flops_row += h_prev * h
        h_prev = h
    flops_row += BO * H_total
    flops = 2 * n_pad * flops_row
    trans = 2 * n_pad * (h0 + H_total)           # silu(exp) + sin per activation elem
    bytes_accessed = 2 * n_pad * dx + 4 * BO * n_pad
    bytes_accessed += sum(int(c.size) * c.dtype.itemsize for c in const_args)

    def _call(single_buffer_weights):
        in_specs = [pl.BlockSpec((tn, dx), lambda i: (i, 0))]            # streamed x
        in_specs += [_const_spec(c.shape, single_buffer_weights) for c in const_args]
        return pl.pallas_call(
            kernel,
            out_shape=jax.ShapeDtypeStruct((BO, n_pad), jnp.float32),
            grid_spec=pltpu.PrefetchScalarGridSpec(
                num_scalar_prefetch=0,
                grid=(n_tiles,),
                in_specs=in_specs,
                out_specs=pl.BlockSpec((BO, tn), lambda i: (0, i)),
                scratch_shapes=[pltpu.VMEM((tn, H_total), jnp.bfloat16)]),
            compiler_params=pltpu.CompilerParams(
                dimension_semantics=("parallel",),       # mesh tiles -> megacore
                vmem_limit_bytes=int(vmem_limit)),
            cost_estimate=pl.CostEstimate(flops=int(flops),
                                          transcendentals=int(trans),
                                          bytes_accessed=int(bytes_accessed)),
        )(*kernel_args)

    try:
        out_flat = _call(True)
    except Exception:
        # Fallback for JAX builds that reject single-buffered (Buffered(1)) specs.
        out_flat = _call(False)

    # (B*out_size, n_pad) -> (B, out_size, N) -> (B, N, out_size)
    out = out_flat.reshape(B, out_size, n_pad)[:, :, :N]
    return jnp.transpose(out, (0, 2, 1))


# -------------------- parameter init + reference --------------------

def _linear_params(key, fan_in, fan_out, dtype=jnp.float32):
    kw, kb = jax.random.split(key)
    bound = 1.0 / (fan_in ** 0.5)
    w = jax.random.uniform(kw, (fan_in, fan_out), dtype, -bound, bound)
    b = jax.random.uniform(kb, (1, fan_out), dtype, -bound, bound)
    return w, b


def init_params(key, in_size_x, in_size_a, latent_size, out_size, hidden_list):
    n_linear = 3 + 2 * len(hidden_list)
    keys = jax.random.split(key, n_linear)
    ki = iter(keys)
    params = []
    params += list(_linear_params(next(ki), in_size_x, hidden_list[0]))   # fc_x_in
    params += list(_linear_params(next(ki), in_size_a, hidden_list[0]))   # fc_a_in
    h_in = hidden_list[0]
    for h in hidden_list:
        params += list(_linear_params(next(ki), h_in, h))                 # net_x[l]
        params += list(_linear_params(next(ki), h_in, h))                 # net_a[l]
        h_in = h
    params += list(_linear_params(next(ki), latent_size, out_size))       # fc_out
    return tuple(params)


def reference(x, a_mesh, params, num_layers):
    """Original module structure; trunk/einsum operands rounded to bf16 to mirror
    the kernel's MXU precision (accumulation stays f32)."""
    bfr = lambda t: t.astype(jnp.bfloat16).astype(jnp.float32)
    act_x = lambda z: jax.nn.silu(z) + jnp.sin(z)
    wx_in, bx_in, wa_in, ba_in = params[:4]
    layer_p = params[4:4 + 4 * num_layers]
    w_out, b_out = params[4 + 4 * num_layers:]
    with jax.default_matmul_precision("highest"):
        xh = act_x(jnp.dot(bfr(x), bfr(wx_in)) + bx_in)
        ah = _act_a(a_mesh @ wa_in + ba_in)
        out = 0.0
        for i in range(num_layers):
            wx, bx, wa, ba = layer_p[4 * i: 4 * i + 4]
            ah = _act_a(ah @ wa + ba)
            xh = act_x(jnp.dot(bfr(xh), bfr(wx)) + bx)
            out = out + jnp.einsum('bmh,nh->bnm', bfr(ah), bfr(xh))
        out = out / num_layers
        return out @ w_out + b_out


def _run_case(seed, mesh_size, in_size_x, n_batch, latent_size, in_size_a,
              hidden_list, out_size, tile_n):
    key = jax.random.PRNGKey(seed)
    kx, ka, kp = jax.random.split(key, 3)
    x = jax.random.normal(kx, (mesh_size, in_size_x), jnp.float32)
    a_mesh = jax.random.normal(ka, (n_batch, latent_size, in_size_a), jnp.float32)
    params = init_params(kp, in_size_x, in_size_a, latent_size, out_size, hidden_list)

    out = multionet_forward(x, a_mesh, params, hidden_list, out_size, tile_n=tile_n)
    out = jax.block_until_ready(out)

    ref = reference(x, a_mesh, params, len(hidden_list))
    assert out.shape == (n_batch, mesh_size, out_size), out.shape
    max_err = float(jnp.max(jnp.abs(out - ref)))
    assert jnp.allclose(out, ref, atol=5e-2, rtol=3e-2), (
        f"mismatch vs JAX reference, max|diff|={max_err}")


if __name__ == "__main__":
    # Small shapes consistent with the module's forward signature; single-tile path.
    _run_case(seed=0, mesh_size=16, in_size_x=2, n_batch=2, latent_size=8,
              in_size_a=4, hidden_list=[32, 32], out_size=3, tile_n=None)
    # Tiled + zero-padded mesh path (3 tiles of 128, last padded) with unequal
    # hidden sizes (exercises the concatenated-activation scratch offsets).
    _run_case(seed=1, mesh_size=300, in_size_x=2, n_batch=3, latent_size=8,
              in_size_a=4, hidden_list=[64, 48], out_size=5, tile_n=128)
    print("KERNEL_OK")
</pallas_src>

<mosaic_0001>
module attributes {stable_mosaic.version = 11 : i64} {
  func.func @kernel(%arg0: i32, %arg1: memref<16x2xbf16, #tpu.memory_space<vmem>>, %arg2: memref<2x32xbf16, #tpu.memory_space<vmem>>, %arg3: memref<1x32xf32, #tpu.memory_space<vmem>>, %arg4: memref<32x32xbf16, #tpu.memory_space<vmem>>, %arg5: memref<1x32xf32, #tpu.memory_space<vmem>>, %arg6: memref<32x32xbf16, #tpu.memory_space<vmem>>, %arg7: memref<1x32xf32, #tpu.memory_space<vmem>>, %arg8: memref<6x64xbf16, #tpu.memory_space<vmem>>, %arg9: memref<6x1xf32, #tpu.memory_space<vmem>>, %arg10: memref<6x16xf32, #tpu.memory_space<vmem>>, %arg11: memref<16x64xbf16, #tpu.memory_space<vmem>>) attributes {dimension_semantics = [#tpu.dimension_semantics<parallel>], iteration_bounds = array<i64: 1>, scalar_prefetch = 0 : i64, scratch_operands = 1 : i64, tpu.core_type = #tpu.core_type<tc>, window_params = [{transform_indices = @transform_0, window_bounds = array<i64: 16, 2>}, {pipeline_mode = #tpu.pipeline_mode<synchronous>, transform_indices = @transform_1, window_bounds = array<i64: 2, 32>}, {pipeline_mode = #tpu.pipeline_mode<synchronous>, transform_indices = @transform_2, window_bounds = array<i64: 1, 32>}, {pipeline_mode = #tpu.pipeline_mode<synchronous>, transform_indices = @transform_3, window_bounds = array<i64: 32, 32>}, {pipeline_mode = #tpu.pipeline_mode<synchronous>, transform_indices = @transform_4, window_bounds = array<i64: 1, 32>}, {pipeline_mode = #tpu.pipeline_mode<synchronous>, transform_indices = @transform_5, window_bounds = array<i64: 32, 32>}, {pipeline_mode = #tpu.pipeline_mode<synchronous>, transform_indices = @transform_6, window_bounds = array<i64: 1, 32>}, {pipeline_mode = #tpu.pipeline_mode<synchronous>, transform_indices = @transform_7, window_bounds = array<i64: 6, 64>}, {pipeline_mode = #tpu.pipeline_mode<synchronous>, transform_indices = @transform_8, window_bounds = array<i64: 6, 1>}, {transform_indices = @transform_9, window_bounds = array<i64: 6, 16>}]} {
    %c0 = arith.constant 0 : index
    %c0_0 = arith.constant 0 : index
    %0 = vector.load %arg3[%c0, %c0_0] : memref<1x32xf32, #tpu.memory_space<vmem>>, vector<1x32xf32>
    %c0_1 = arith.constant 0 : index
    %c0_2 = arith.constant 0 : index
    %1 = vector.load %arg1[%c0_1, %c0_2] : memref<16x2xbf16, #tpu.memory_space<vmem>>, vector<16x1xbf16>
    %2 = arith.extf %1 : vector<16x1xbf16> to vector<16x1xf32>
    %c0_3 = arith.constant 0 : index
    %c0_4 = arith.constant 0 : index
    %3 = vector.load %arg2[%c0_3, %c0_4] : memref<2x32xbf16, #tpu.memory_space<vmem>>, vector<1x32xbf16>
    %4 = arith.extf %3 : vector<1x32xbf16> to vector<1x32xf32>
    %5 = vector.broadcast %2 : vector<16x1xf32> to vector<16x32xf32>
    %6 = vector.broadcast %4 : vector<1x32xf32> to vector<16x32xf32>
    %7 = arith.mulf %5, %6 : vector<16x32xf32>
    %8 = vector.broadcast %0 : vector<1x32xf32> to vector<16x32xf32>
    %9 = arith.addf %8, %7 : vector<16x32xf32>
    %c0_5 = arith.constant 0 : index
    %c1 = arith.constant 1 : index
    %10 = vector.load %arg1[%c0_5, %c1] : memref<16x2xbf16, #tpu.memory_space<vmem>>, vector<16x1xbf16>
    %11 = arith.extf %10 : vector<16x1xbf16> to vector<16x1xf32>
    %c1_6 = arith.constant 1 : index
    %c0_7 = arith.constant 0 : index
    %12 = vector.load %arg2[%c1_6, %c0_7] : memref<2x32xbf16, #tpu.memory_space<vmem>>, vector<1x32xbf16>
    %13 = arith.extf %12 : vector<1x32xbf16> to vector<1x32xf32>
    %14 = vector.broadcast %11 : vector<16x1xf32> to vector<16x32xf32>
    %15 = vector.broadcast %13 : vector<1x32xf32> to vector<16x32xf32>
    %16 = arith.mulf %14, %15 : vector<16x32xf32>
    %17 = arith.addf %9, %16 : vector<16x32xf32>
    %18 = arith.negf %17 : vector<16x32xf32>
    %19 = math.exp %18 : vector<16x32xf32>
    %cst = arith.constant 1.000000e+00 : f32
    %20 = vector.broadcast %cst : f32 to vector<16x32xf32>
    %21 = arith.addf %20, %19 : vector<16x32xf32>
    %22 = arith.divf %20, %21 : vector<16x32xf32>
    %23 = arith.mulf %17, %22 : vector<16x32xf32>
    %24 = math.sin %17 : vector<16x32xf32>
    %25 = arith.addf %23, %24 : vector<16x32xf32>
    %26 = arith.truncf %25 : vector<16x32xf32> to vector<16x32xbf16>
    %c0_8 = arith.constant 0 : index
    %c0_9 = arith.constant 0 : index
    %27 = vector.load %arg4[%c0_8, %c0_9] : memref<32x32xbf16, #tpu.memory_space<vmem>>, vector<32x32xbf16>
    %cst_10 = arith.constant dense<0.000000e+00> : vector<16x32xf32>
    %28 = tpu.matmul %26, %27, %cst_10 {dimension_numbers = #tpu.dot_dimension_numbers<[1], [0], [0], [1], [0, 0, 1, 1], [], []>} : vector<16x32xbf16>, vector<32x32xbf16>, vector<16x32xf32> -> vector<16x32xf32>
    %c0_11 = arith.constant 0 : index
    %c0_12 = arith.constant 0 : index
    %29 = vector.load %arg5[%c0_11, %c0_12] : memref<1x32xf32, #tpu.memory_space<vmem>>, vector<1x32xf32>
    %30 = vector.broadcast %29 : vector<1x32xf32> to vector<16x32xf32>
    %31 = arith.addf %28, %30 : vector<16x32xf32>
    %32 = arith.negf %31 : vector<16x32xf32>
    %33 = math.exp %32 : vector<16x32xf32>
    %cst_13 = arith.constant 1.000000e+00 : f32
    %34 = vector.broadcast %cst_13 : f32 to vector<16x32xf32>
    %35 = arith.addf %34, %33 : vector<16x32xf32>
    %36 = arith.divf %34, %35 : vector<16x32xf32>
    %37 = arith.mulf %31, %36 : vector<16x32xf32>
    %38 = math.sin %31 : vector<16x32xf32>
    %39 = arith.addf %37, %38 : vector<16x32xf32>
    %40 = arith.truncf %39 : vector<16x32xf32> to vector<16x32xbf16>
    %c0_14 = arith.constant 0 : index
    %c0_15 = arith.constant 0 : index
    %41 = vector.load %arg11[%c0_14, %c0_15] : memref<16x64xbf16, #tpu.memory_space<vmem>>, vector<16x32xbf16>
    tpu.vector_store %arg11[%c0_14, %c0_15], %40 {strides = array<i32>} : memref<16x64xbf16, #tpu.memory_space<vmem>>, vector<16x32xbf16>,
    %c0_16 = arith.constant 0 : index
    %c0_17 = arith.constant 0 : index
    %42 = vector.load %arg6[%c0_16, %c0_17] : memref<32x32xbf16, #tpu.memory_space<vmem>>, vector<32x32xbf16>
    %cst_18 = arith.constant dense<0.000000e+00> : vector<16x32xf32>
    %43 = tpu.matmul %40, %42, %cst_18 {dimension_numbers = #tpu.dot_dimension_numbers<[1], [0], [0], [1], [0, 0, 1, 1], [], []>} : vector<16x32xbf16>, vector<32x32xbf16>, vector<16x32xf32> -> vector<16x32xf32>
    %c0_19 = arith.constant 0 : index
    %c0_20 = arith.constant 0 : index
    %44 = vector.load %arg7[%c0_19, %c0_20] : memref<1x32xf32, #tpu.memory_space<vmem>>, vector<1x32xf32>
    %45 = vector.broadcast %44 : vector<1x32xf32> to vector<16x32xf32>
    %46 = arith.addf %43, %45 : vector<16x32xf32>
    %47 = arith.negf %46 : vector<16x32xf32>
    %48 = math.exp %47 : vector<16x32xf32>
    %cst_21 = arith.constant 1.000000e+00 : f32
    %49 = vector.broadcast %cst_21 : f32 to vector<16x32xf32>
    %50 = arith.addf %49, %48 : vector<16x32xf32>
    %51 = arith.divf %49, %50 : vector<16x32xf32>
    %52 = arith.mulf %46, %51 : vector<16x32xf32>
    %53 = math.sin %46 : vector<16x32xf32>
    %54 = arith.addf %52, %53 : vector<16x32xf32>
    %55 = arith.truncf %54 : vector<16x32xf32> to vector<16x32xbf16>
    %c0_22 = arith.constant 0 : index
    %c32 = arith.constant 32 : index
    %56 = vector.load %arg11[%c0_22, %c32] : memref<16x64xbf16, #tpu.memory_space<vmem>>, vector<16x32xbf16>
    tpu.vector_store %arg11[%c0_22, %c32], %55 {strides = array<i32>} : memref<16x64xbf16, #tpu.memory_space<vmem>>, vector<16x32xbf16>,
    %c0_23 = arith.constant 0 : index
    %c0_24 = arith.constant 0 : index
    %57 = vector.load %arg8[%c0_23, %c0_24] : memref<6x64xbf16, #tpu.memory_space<vmem>>, vector<6x64xbf16>
    %c0_25 = arith.constant 0 : index
    %c0_26 = arith.constant 0 : index
    %58 = vector.load %arg11[%c0_25, %c0_26] : memref<16x64xbf16, #tpu.memory_space<vmem>>, vector<16x64xbf16>
    %cst_27 = arith.constant dense<0.000000e+00> : vector<6x16xf32>
    %59 = tpu.matmul %57, %58, %cst_27 {dimension_numbers = #tpu.dot_dimension_numbers<[1], [1], [0], [0], [0, 0, 1, 0], [], []>} : vector<6x64xbf16>, vector<16x64xbf16>, vector<6x16xf32> -> vector<6x16xf32>
    %c0_28 = arith.constant 0 : index
    %c0_29 = arith.constant 0 : index
    %60 = vector.load %arg9[%c0_28, %c0_29] : memref<6x1xf32, #tpu.memory_space<vmem>>, vector<6x1xf32>
    %61 = vector.broadcast %60 : vector<6x1xf32> to vector<6x16xf32>
    %62 = arith.addf %59, %61 : vector<6x16xf32>
    %c0_30 = arith.constant 0 : index
    %c0_31 = arith.constant 0 : index
    %63 = vector.load %arg10[%c0_30, %c0_31] : memref<6x16xf32, #tpu.memory_space<vmem>>, vector<6x16xf32>
    tpu.vector_store %arg10[%c0_30, %c0_31], %62 {strides = array<i32>} : memref<6x16xf32, #tpu.memory_space<vmem>>, vector<6x16xf32>,
    return
  }
  func.func @transform_0(%arg0: i32) -> (i32, i32) {
    %c0_i32 = arith.constant 0 : i32
    %c0_i32_0 = arith.constant 0 : i32
    return %arg0, %c0_i32 : i32, i32
  }
  func.func @transform_1(%arg0: i32) -> (i32, i32) {
    %c0_i32 = arith.constant 0 : i32
    %c0_i32_0 = arith.constant 0 : i32
    %c0_i32_1 = arith.constant 0 : i32
    return %c0_i32, %c0_i32_0 : i32, i32
  }
  func.func @transform_2(%arg0: i32) -> (i32, i32) {
    %c0_i32 = arith.constant 0 : i32
    %c0_i32_0 = arith.constant 0 : i32
    %c0_i32_1 = arith.constant 0 : i32
    return %c0_i32, %c0_i32_0 : i32, i32
  }
  func.func @transform_3(%arg0: i32) -> (i32, i32) {
    %c0_i32 = arith.constant 0 : i32
    %c0_i32_0 = arith.constant 0 : i32
    %c0_i32_1 = arith.constant 0 : i32
    return %c0_i32, %c0_i32_0 : i32, i32
  }
  func.func @transform_4(%arg0: i32) -> (i32, i32) {
    %c0_i32 = arith.constant 0 : i32
    %c0_i32_0 = arith.constant 0 : i32
    %c0_i32_1 = arith.constant 0 : i32
    return %c0_i32, %c0_i32_0 : i32, i32
  }
  func.func @transform_5(%arg0: i32) -> (i32, i32) {
    %c0_i32 = arith.constant 0 : i32
    %c0_i32_0 = arith.constant 0 : i32
    %c0_i32_1 = arith.constant 0 : i32
    return %c0_i32, %c0_i32_0 : i32, i32
  }
  func.func @transform_6(%arg0: i32) -> (i32, i32) {
    %c0_i32 = arith.constant 0 : i32
    %c0_i32_0 = arith.constant 0 : i32
    %c0_i32_1 = arith.constant 0 : i32
    return %c0_i32, %c0_i32_0 : i32, i32
  }
  func.func @transform_7(%arg0: i32) -> (i32, i32) {
    %c0_i32 = arith.constant 0 : i32
    %c0_i32_0 = arith.constant 0 : i32
    %c0_i32_1 = arith.constant 0 : i32
    return %c0_i32, %c0_i32_0 : i32, i32
  }
  func.func @transform_8(%arg0: i32) -> (i32, i32) {
    %c0_i32 = arith.constant 0 : i32
    %c0_i32_0 = arith.constant 0 : i32
    %c0_i32_1 = arith.constant 0 : i32
    return %c0_i32, %c0_i32_0 : i32, i32
  }
  func.func @transform_9(%arg0: i32) -> (i32, i32) {
    %c0_i32 = arith.constant 0 : i32
    %c0_i32_0 = arith.constant 0 : i32
    return %c0_i32, %arg0 : i32, i32
  }
}

module attributes {stable_mosaic.version = 11 : i64} {
  func.func @kernel(%arg0: i32, %arg1: memref<16x2xbf16, #tpu.memory_space<vmem>>, %arg2: memref<2x32xbf16, #tpu.memory_space<vmem>>, %arg3: memref<1x32xf32, #tpu.memory_space<vmem>>, %arg4: memref<32x32xbf16, #tpu.memory_space<vmem>>, %arg5: memref<1x32xf32, #tpu.memory_space<vmem>>, %arg6: memref<32x32xbf16, #tpu.memory_space<vmem>>, %arg7: memref<1x32xf32, #tpu.memory_space<vmem>>, %arg8: memref<6x64xbf16, #tpu.memory_space<vmem>>, %arg9: memref<6x1xf32, #tpu.memory_space<vmem>>, %arg10: memref<6x16xf32, #tpu.memory_space<vmem>>, %arg11: memref<16x64xbf16, #tpu.memory_space<vmem>>) attributes {dimension_semantics = [#tpu.dimension_semantics<parallel>], iteration_bounds = array<i64: 1>, scalar_prefetch = 0 : i64, scratch_operands = 1 : i64, tpu.core_type = #tpu.core_type<tc>, window_params = [{transform_indices = @transform_0, window_bounds = array<i64: 16, 2>}, {pipeline_mode = #tpu.pipeline_mode<synchronous>, transform_indices = @transform_1, window_bounds = array<i64: 2, 32>}, {pipeline_mode = #tpu.pipeline_mode<synchronous>, transform_indices = @transform_2, window_bounds = array<i64: 1, 32>}, {pipeline_mode = #tpu.pipeline_mode<synchronous>, transform_indices = @transform_3, window_bounds = array<i64: 32, 32>}, {pipeline_mode = #tpu.pipeline_mode<synchronous>, transform_indices = @transform_4, window_bounds = array<i64: 1, 32>}, {pipeline_mode = #tpu.pipeline_mode<synchronous>, transform_indices = @transform_5, window_bounds = array<i64: 32, 32>}, {pipeline_mode = #tpu.pipeline_mode<synchronous>, transform_indices = @transform_6, window_bounds = array<i64: 1, 32>}, {pipeline_mode = #tpu.pipeline_mode<synchronous>, transform_indices = @transform_7, window_bounds = array<i64: 6, 64>}, {pipeline_mode = #tpu.pipeline_mode<synchronous>, transform_indices = @transform_8, window_bounds = array<i64: 6, 1>}, {transform_indices = @transform_9, window_bounds = array<i64: 6, 16>}]} {
    %c0 = arith.constant 0 : index
    %c0_0 = arith.constant 0 : index
    %0 = vector.load %arg3[%c0, %c0_0] : memref<1x32xf32, #tpu.memory_space<vmem>>, vector<1x32xf32>
    %c0_1 = arith.constant 0 : index
    %c0_2 = arith.constant 0 : index
    %1 = vector.load %arg1[%c0_1, %c0_2] : memref<16x2xbf16, #tpu.memory_space<vmem>>, vector<16x1xbf16>
    %2 = arith.extf %1 : vector<16x1xbf16> to vector<16x1xf32>
    %c0_3 = arith.constant 0 : index
    %c0_4 = arith.constant 0 : index
    %3 = vector.load %arg2[%c0_3, %c0_4] : memref<2x32xbf16, #tpu.memory_space<vmem>>, vector<1x32xbf16>
    %4 = arith.extf %3 : vector<1x32xbf16> to vector<1x32xf32>
    %5 = vector.broadcast %2 : vector<16x1xf32> to vector<16x32xf32>
    %6 = vector.broadcast %4 : vector<1x32xf32> to vector<16x32xf32>
    %7 = arith.mulf %5, %6 : vector<16x32xf32>
    %8 = vector.broadcast %0 : vector<1x32xf32> to vector<16x32xf32>
    %9 = arith.addf %8, %7 : vector<16x32xf32>
    %c0_5 = arith.constant 0 : index
    %c1 = arith.constant 1 : index
    %10 = vector.load %arg1[%c0_5, %c1] : memref<16x2xbf16, #tpu.memory_space<vmem>>, vector<16x1xbf16>
    %11 = arith.extf %10 : vector<16x1xbf16> to vector<16x1xf32>
    %c1_6 = arith.constant 1 : index
    %c0_7 = arith.constant 0 : index
    %12 = vector.load %arg2[%c1_6, %c0_7] : memref<2x32xbf16, #tpu.memory_space<vmem>>, vector<1x32xbf16>
    %13 = arith.extf %12 : vector<1x32xbf16> to vector<1x32xf32>
    %14 = vector.broadcast %11 : vector<16x1xf32> to vector<16x32xf32>
    %15 = vector.broadcast %13 : vector<1x32xf32> to vector<16x32xf32>
    %16 = arith.mulf %14, %15 : vector<16x32xf32>
    %17 = arith.addf %9, %16 : vector<16x32xf32>
    %18 = arith.negf %17 : vector<16x32xf32>
    %19 = math.exp %18 : vector<16x32xf32>
    %cst = arith.constant 1.000000e+00 : f32
    %20 = vector.broadcast %cst : f32 to vector<16x32xf32>
    %21 = arith.addf %20, %19 : vector<16x32xf32>
    %22 = arith.divf %20, %21 : vector<16x32xf32>
    %23 = arith.mulf %17, %22 : vector<16x32xf32>
    %24 = math.sin %17 : vector<16x32xf32>
    %25 = arith.addf %23, %24 : vector<16x32xf32>
    %26 = arith.truncf %25 : vector<16x32xf32> to vector<16x32xbf16>
    %c0_8 = arith.constant 0 : index
    %c0_9 = arith.constant 0 : index
    %27 = vector.load %arg4[%c0_8, %c0_9] : memref<32x32xbf16, #tpu.memory_space<vmem>>, vector<32x32xbf16>
    %cst_10 = arith.constant dense<0.000000e+00> : vector<16x32xf32>
    %28 = tpu.matmul %26, %27, %cst_10 {dimension_numbers = #tpu.dot_dimension_numbers<[1], [0], [0], [1], [0, 0, 1, 1], [], []>} : vector<16x32xbf16>, vector<32x32xbf16>, vector<16x32xf32> -> vector<16x32xf32>
    %c0_11 = arith.constant 0 : index
    %c0_12 = arith.constant 0 : index
    %29 = vector.load %arg5[%c0_11, %c0_12] : memref<1x32xf32, #tpu.memory_space<vmem>>, vector<1x32xf32>
    %30 = vector.broadcast %29 : vector<1x32xf32> to vector<16x32xf32>
    %31 = arith.addf %28, %30 : vector<16x32xf32>
    %32 = arith.negf %31 : vector<16x32xf32>
    %33 = math.exp %32 : vector<16x32xf32>
    %cst_13 = arith.constant 1.000000e+00 : f32
    %34 = vector.broadcast %cst_13 : f32 to vector<16x32xf32>
    %35 = arith.addf %34, %33 : vector<16x32xf32>
    %36 = arith.divf %34, %35 : vector<16x32xf32>
    %37 = arith.mulf %31, %36 : vector<16x32xf32>
    %38 = math.sin %31 : vector<16x32xf32>
    %39 = arith.addf %37, %38 : vector<16x32xf32>
    %40 = arith.truncf %39 : vector<16x32xf32> to vector<16x32xbf16>
    %c0_14 = arith.constant 0 : index
    %c0_15 = arith.constant 0 : index
    %41 = vector.load %arg11[%c0_14, %c0_15] : memref<16x64xbf16, #tpu.memory_space<vmem>>, vector<16x32xbf16>
    tpu.vector_store %arg11[%c0_14, %c0_15], %40 {strides = array<i32>} : memref<16x64xbf16, #tpu.memory_space<vmem>>, vector<16x32xbf16>,
    %c0_16 = arith.constant 0 : index
    %c0_17 = arith.constant 0 : index
    %42 = vector.load %arg6[%c0_16, %c0_17] : memref<32x32xbf16, #tpu.memory_space<vmem>>, vector<32x32xbf16>
    %cst_18 = arith.constant dense<0.000000e+00> : vector<16x32xf32>
    %43 = tpu.matmul %40, %42, %cst_18 {dimension_numbers = #tpu.dot_dimension_numbers<[1], [0], [0], [1], [0, 0, 1, 1], [], []>} : vector<16x32xbf16>, vector<32x32xbf16>, vector<16x32xf32> -> vector<16x32xf32>
    %c0_19 = arith.constant 0 : index
    %c0_20 = arith.constant 0 : index
    %44 = vector.load %arg7[%c0_19, %c0_20] : memref<1x32xf32, #tpu.memory_space<vmem>>, vector<1x32xf32>
    %45 = vector.broadcast %44 : vector<1x32xf32> to vector<16x32xf32>
    %46 = arith.addf %43, %45 : vector<16x32xf32>
    %47 = arith.negf %46 : vector<16x32xf32>
    %48 = math.exp %47 : vector<16x32xf32>
    %cst_21 = arith.constant 1.000000e+00 : f32
    %49 = vector.broadcast %cst_21 : f32 to vector<16x32xf32>
    %50 = arith.addf %49, %48 : vector<16x32xf32>
    %51 = arith.divf %49, %50 : vector<16x32xf32>
    %52 = arith.mulf %46, %51 : vector<16x32xf32>
    %53 = math.sin %46 : vector<16x32xf32>
    %54 = arith.addf %52, %53 : vector<16x32xf32>
    %55 = arith.truncf %54 : vector<16x32xf32> to vector<16x32xbf16>
    %c0_22 = arith.constant 0 : index
    %c32 = arith.constant 32 : index
    %56 = vector.load %arg11[%c0_22, %c32] : memref<16x64xbf16, #tpu.memory_space<vmem>>, vector<16x32xbf16>
    tpu.vector_store %arg11[%c0_22, %c32], %55 {strides = array<i32>} : memref<16x64xbf16, #tpu.memory_space<vmem>>, vector<16x32xbf16>,
    %c0_23 = arith.constant 0 : index
    %c0_24 = arith.constant 0 : index
    %57 = vector.load %arg8[%c0_23, %c0_24] : memref<6x64xbf16, #tpu.memory_space<vmem>>, vector<6x64xbf16>
    %c0_25 = arith.constant 0 : index
    %c0_26 = arith.constant 0 : index
    %58 = vector.load %arg11[%c0_25, %c0_26] : memref<16x64xbf16, #tpu.memory_space<vmem>>, vector<16x64xbf16>
    %cst_27 = arith.constant dense<0.000000e+00> : vector<6x16xf32>
    %59 = tpu.matmul %57, %58, %cst_27 {dimension_numbers = #tpu.dot_dimension_numbers<[1], [1], [0], [0], [0, 0, 1, 0], [], []>} : vector<6x64xbf16>, vector<16x64xbf16>, vector<6x16xf32> -> vector<6x16xf32>
    %c0_28 = arith.constant 0 : index
    %c0_29 = arith.constant 0 : index
    %60 = vector.load %arg9[%c0_28, %c0_29] : memref<6x1xf32, #tpu.memory_space<vmem>>, vector<6x1xf32>
    %61 = vector.broadcast %60 : vector<6x1xf32> to vector<6x16xf32>
    %62 = arith.addf %59, %61 : vector<6x16xf32>
    %c0_30 = arith.constant 0 : index
    %c0_31 = arith.constant 0 : index
    %63 = vector.load %arg10[%c0_30, %c0_31] : memref<6x16xf32, #tpu.memory_space<vmem>>, vector<6x16xf32>
    tpu.vector_store %arg10[%c0_30, %c0_31], %62 {strides = array<i32>} : memref<6x16xf32, #tpu.memory_space<vmem>>, vector<6x16xf32>,
    return
  }
  func.func @transform_0(%arg0: i32) -> (i32, i32) {
    %c0_i32 = arith.constant 0 : i32
    %c0_i32_0 = arith.constant 0 : i32
    return %arg0, %c0_i32 : i32, i32
  }
  func.func @transform_1(%arg0: i32) -> (i32, i32) {
    %c0_i32 = arith.constant 0 : i32
    %c0_i32_0 = arith.constant 0 : i32
    %c0_i32_1 = arith.constant 0 : i32
    return %c0_i32, %c0_i32_0 : i32, i32
  }
  func.func @transform_2(%arg0: i32) -> (i32, i32) {
    %c0_i32 = arith.constant 0 : i32
    %c0_i32_0 = arith.constant 0 : i32
    %c0_i32_1 = arith.constant 0 : i32
    return %c0_i32, %c0_i32_0 : i32, i32
  }
  func.func @transform_3(%arg0: i32) -> (i32, i32) {
    %c0_i32 = arith.constant 0 : i32
    %c0_i32_0 = arith.constant 0 : i32
    %c0_i32_1 = arith.constant 0 : i32
    return %c0_i32, %c0_i32_0 : i32, i32
  }
  func.func @transform_4(%arg0: i32) -> (i32, i32) {
    %c0_i32 = arith.constant 0 : i32
    %c0_i32_0 = arith.constant 0 : i32
    %c0_i32_1 = arith.constant 0 : i32
    return %c0_i32, %c0_i32_0 : i32, i32
  }
  func.func @transform_5(%arg0: i32) -> (i32, i32) {
    %c0_i32 = arith.constant 0 : i32
    %c0_i32_0 = arith.constant 0 : i32
    %c0_i32_1 = arith.constant 0 : i32
    return %c0_i32, %c0_i32_0 : i32, i32
  }
  func.func @transform_6(%arg0: i32) -> (i32, i32) {
    %c0_i32 = arith.constant 0 : i32
    %c0_i32_0 = arith.constant 0 : i32
    %c0_i32_1 = arith.constant 0 : i32
    return %c0_i32, %c0_i32_0 : i32, i32
  }
  func.func @transform_7(%arg0: i32) -> (i32, i32) {
    %c0_i32 = arith.constant 0 : i32
    %c0_i32_0 = arith.constant 0 : i32
    %c0_i32_1 = arith.constant 0 : i32
    return %c0_i32, %c0_i32_0 : i32, i32
  }
  func.func @transform_8(%arg0: i32) -> (i32, i32) {
    %c0_i32 = arith.constant 0 : i32
    %c0_i32_0 = arith.constant 0 : i32
    %c0_i32_1 = arith.constant 0 : i32
    return %c0_i32, %c0_i32_0 : i32, i32
  }
  func.func @transform_9(%arg0: i32) -> (i32, i32) {
    %c0_i32 = arith.constant 0 : i32
    %c0_i32_0 = arith.constant 0 : i32
    return %c0_i32, %arg0 : i32, i32
  }
}

</mosaic_0001>

<llo_original>
// kernel: tpu_custom_call.1
$region0: #{tpu_custom_call.1}
  #allocation0 [shape = 'u32[]', space=smem, size = 0x4, offset = 0x4, fixed_abs, tag = 'smem constant byte address 0x4 - core index']
  #allocation1 [shape = 'u32[144,128]{1,0:T(1,128)}', space=vmem, size = 0x12000, scoped, tag = 'internal scratch']
  #allocation2 [shape = 'bf16[16,64]{1,0:T(8,128)(2,1)}', space=vmem, size = 0x1000, scoped, tag = 'scratch operand']
  %s0 = inlined_call_operand.vmem [shape: bf16[16,2], index: 0, kind: input, shape index: {}]
  %s1 = inlined_call_operand.vmem [shape: bf16[2,32], index: 1, kind: input, shape index: {}]
  %s2 = inlined_call_operand.vmem [shape: f32[1,32], index: 2, kind: input, shape index: {}]
  %s3 = inlined_call_operand.vmem [shape: bf16[32,32], index: 3, kind: input, shape index: {}]
  %s4 = inlined_call_operand.vmem [shape: f32[1,32], index: 4, kind: input, shape index: {}]
  %s5 = inlined_call_operand.hbm [shape: bf16[32,32], index: 5, kind: input, shape index: {}]
  %s6 = inlined_call_operand.vmem [shape: f32[1,32], index: 6, kind: input, shape index: {}]
  %s7 = inlined_call_operand.vmem [shape: bf16[6,64], index: 7, kind: input, shape index: {}]
  %s8 = inlined_call_operand.vmem [shape: f32[6,1], index: 8, kind: input, shape index: {}]
  %s9 = inlined_call_operand.hbm [shape: f32[6,16], index: 9, kind: output, shape index: {}]
  %s10 = sld [smem:[#allocation0]]
  $region50: #{tpu_custom_call.1} parent=0
    _
  %s12 = ssub.s32 1, %s10
  %s13 = scalar_select 0, %s12, %s10
  $region1: #{tpu_custom_call.1} parent=0
    #allocation3 [shape = 'u8[8192]{0}', space=vmem, size = 0x2000, scoped, tag = 'input window, operand 5, single buffered']
    #allocation4 [shape = 's32[1]{0}', space=sflag, size = 0x4, scoped, tag = 'scoped memory for tpu_custom_call.1']
    #allocation5 [shape = 's32[1]{0}', space=sflag, size = 0x4, scoped, tag = 'scoped memory for tpu_custom_call.1']
    #allocation6 [shape = 'u8[4096]{0}', space=vmem, size = 0x1000, scoped, tag = 'output window, operand 0, single buffered']
    %14 = vsyncpa [#allocation4], 0
    %15 = vsyncpa [#allocation5], 0
    // Predicated region
    $region2: #{tpu_custom_call.1} parent=1 // pred_check
      _
    $region3: #{tpu_custom_call.1} parent=1 // pred_check_branch
      %17 = sbr.rel (0) target = $region5
    $region4: #{tpu_custom_call.1} parent=1 // pred_region
      _
    $region5: #{tpu_custom_call.1} parent=1 // pred_fallthru
      _
    // Predicated region
    $region6: #{tpu_custom_call.1} parent=1 // pred_check
      _
    $region7: #{tpu_custom_call.1} parent=1 // pred_check_branch
      %19 = sbr.rel (0) target = $region9
    $region8: #{tpu_custom_call.1} parent=1 // pred_region
      _
    $region9: #{tpu_custom_call.1} parent=1 // pred_fallthru
      _
    // Predicated region
    $region10: #{tpu_custom_call.1} parent=1 // pred_check
      _
    $region11: #{tpu_custom_call.1} parent=1 // pred_check_branch
      %21 = sbr.rel (0) target = $region13
    $region12: #{tpu_custom_call.1} parent=1 // pred_region
      _
    $region13: #{tpu_custom_call.1} parent=1 // pred_fallthru
      _
    // Predicated region
    $region14: #{tpu_custom_call.1} parent=1 // pred_check
      _
    $region15: #{tpu_custom_call.1} parent=1 // pred_check_branch
      %23 = sbr.rel (0) target = $region17
    $region16: #{tpu_custom_call.1} parent=1 // pred_region
      _
    $region17: #{tpu_custom_call.1} parent=1 // pred_fallthru
      _
    // Predicated region
    $region18: #{tpu_custom_call.1} parent=1 // pred_check
      _
    $region19: #{tpu_custom_call.1} parent=1 // pred_check_branch
      %25 = sbr.rel (0) target = $region21
    $region20: #{tpu_custom_call.1} parent=1 // pred_region
      _
    $region21: #{tpu_custom_call.1} parent=1 // pred_fallthru
      _
    // Predicated region
    $region22: #{tpu_custom_call.1} parent=1 // pred_check
      _
    $region23: #{tpu_custom_call.1} parent=1 // pred_check_branch
      %27 = sbr.rel (0) target = $region25
    $region24: #{tpu_custom_call.1} parent=1 // pred_region
      %s29 = ssub.s32 256, 256
      %30 = vsyncadd [#allocation4], %s29
      %s31 = sshll.u32 [#allocation3], 4
      %s32 = int_to_ptr.vmem [resolvable:$true] %s31
      %37 = dma.hbm_to_vmem [thread:$0]  %s5, 256, %s32, [#allocation4], 64, 64, 4
    $region25: #{tpu_custom_call.1} parent=1 // pred_fallthru
      _
    // Predicated region
    $region26: #{tpu_custom_call.1} parent=1 // pred_check
      _
    $region27: #{tpu_custom_call.1} parent=1 // pred_check_branch
      %39 = sbr.rel (0) target = $region29
    $region28: #{tpu_custom_call.1} parent=1 // pred_region
      _
    $region29: #{tpu_custom_call.1} parent=1 // pred_fallthru
      _
    // Predicated region
    $region30: #{tpu_custom_call.1} parent=1 // pred_check
      _
    $region31: #{tpu_custom_call.1} parent=1 // pred_check_branch
      %41 = sbr.rel (0) target = $region33
    $region32: #{tpu_custom_call.1} parent=1 // pred_region
      _
    $region33: #{tpu_custom_call.1} parent=1 // pred_fallthru
      _
    // Predicated region
    $region34: #{tpu_custom_call.1} parent=1 // pred_check
      _
    $region35: #{tpu_custom_call.1} parent=1 // pred_check_branch
      %43 = sbr.rel (0) target = $region37
    $region36: #{tpu_custom_call.1} parent=1 // pred_region
      _
    $region37: #{tpu_custom_call.1} parent=1 // pred_fallthru
      _
    // Predicated region
    $region38: #{tpu_custom_call.1} parent=1 // pred_check
      _
    $region39: #{tpu_custom_call.1} parent=1 // pred_check_branch
      %45 = sbr.rel (0) target = $region41
    $region40: #{tpu_custom_call.1} parent=1 // pred_region
      %46 = dma.done [#allocation4], 256
    $region41: #{tpu_custom_call.1} parent=1 // pred_fallthru
      _
    %v48 = vld [vmem:[%s2] sm:$0x1]
    %v49 = vld [vmem:[%s0] sm:$0xf]
    %v50 = vld [vmem:[%s0 + $0x4] sm:$0xf]
    %v51 = vunpack.c.l.bf16 %v49
    %v52 = vunpack.c.l.bf16 %v50
    %v53 = vld [vmem:[%s1] sm:$0x1]
    %v54 = vunpack.c.l.bf16 %v53
    %56 = vset.pattern.permute.xlu0 0
    %57 = vperm.xlu0 %56, %v51
    %v58 = vpop.permute.xlu0 %57
    %61 = vset.pattern.permute.xlu0 0
    %62 = vperm.xlu0 %61, %v52
    %v63 = vpop.permute.xlu0 %62
    %v65 = vlaneseq
    %v66 = vshrl.u32 %v65, 7
    %v67 = vsub.s32 0, %v66
    %v68 = vrot.slane %v54, %v67
    %v69 = vmul.f32 %v58, %v68
    %v70 = vmul.f32 %v63, %v68
    %v72 = vlaneseq
    %v73 = vshrl.u32 %v72, 7
    %v74 = vsub.s32 0, %v73
    %v75 = vrot.slane %v48, %v74
    %v77 = vadd.f32 %v75, %v69
    %v78 = vadd.f32 %v75, %v70
    %79 = vset.pattern.permute.xlu0 1
    %80 = vperm.xlu0 %79, %v51
    %v81 = vpop.permute.xlu0 %80
    %83 = vset.pattern.permute.xlu0 1
    %84 = vperm.xlu0 %83, %v52
    %v85 = vpop.permute.xlu0 %84
    %v87 = vlaneseq
    %v88 = vshrl.u32 %v87, 7
    %v89 = vsub.s32 1, %v88
    %v90 = vrot.slane %v54, %v89
    %v91 = vmul.f32 %v81, %v90
    %v92 = vmul.f32 %v85, %v90
    %v93 = vadd.f32 %v77, %v91
    %v94 = vadd.f32 %v78, %v92
    %v95 = vxor.u32 %v93, 2147483648
    %v96 = vxor.u32 %v94, 2147483648
    %v97 = vmul.f32 %v95, 1.442695
    %v98 = vpow.pop %v97
    %v99 = vmul.f32 %v96, 1.442695
    %v100 = vpow.pop %v99
    %v101 = vadd.f32 %v98, 1.0
    %v102 = vadd.f32 %v100, 1.0
    %v103 = vrcp.pop %v101
    %v104 = vmul.f32 1.0, %v103
    %v105 = vrcp.pop %v102
    %v106 = vmul.f32 1.0, %v105
    %v107 = vmul.f32 %v93, %v104
    %v108 = vmul.f32 %v94, %v106
    %v109 = vand.u32 2147483647, %v93
    %vm110 = vcmp.le.f32.partialorder %v109, 0.7853982
    %vm111 = vcmp.lt.s32.totalorder %v93, 0
    %v112 = vand.u32 %v93, 2139095040
    %v113 = vshrl.u32 %v112, 23
    %v114 = vsub.s32 %v113, 127
    %v115 = vand.u32 2147483647, %v93
    %v116 = vand.u32 %v115, 8388607
    %v117 = vor.u32 %v116, 8388608
    %v118 = vsub.s32 0, %v117
    %v119 = vadd.s32 %v114, 1
    %vm120 = vcmp.gt.s32.totalorder %v119, 0
    %v121 = vsel %vm120, %v119, 0
    %v122 = vshrl.u32 %v121, 5
    %v123 = vand.u32 %v121, 31
    %v124 = vsub.s32 32, %v123
    %v125 = vshrl.u32 683565275, %v124
    %v126 = vshll.u32 683565275, %v123
    %v127 = vshrl.u32 2475754826, %v124
    %v128 = vor.u32 %v126, %v127
    %v129 = vshll.u32 2475754826, %v123
    %v130 = vshrl.u32 2131351028, %v124
    %v131 = vor.u32 %v129, %v130
    %v132 = vshll.u32 2131351028, %v123
    %v133 = vshrl.u32 2102212464, %v124
    %v134 = vor.u32 %v132, %v133
    %v135 = vshll.u32 2102212464, %v123
    %v136 = vshrl.u32 920167782, %v124
    %v137 = vor.u32 %v135, %v136
    %v138 = vshll.u32 920167782, %v123
    %v139 = vshrl.u32 1326507024, %v124
    %v140 = vor.u32 %v138, %v139
    %vm141 = vcmp.lt.s32.totalorder %v122, 1
    %vm142 = vcmp.lt.s32.totalorder %v122, 2
    %vm143 = vcmp.lt.s32.totalorder %v122, 3
    %vm144 = vcmp.lt.s32.totalorder %v122, 4
    %v145 = vsel %vm141, %v125, %v128
    %v146 = vsel %vm144, %v134, 2102212464
    %v147 = vsel %vm143, %v131, %v146
    %v148 = vsel %vm142, %v145, %v147
    %v149 = vsel %vm141, %v128, %v131
    %v150 = vsel %vm144, %v137, 920167782
    %v151 = vsel %vm143, %v134, %v150
    %v152 = vsel %vm142, %v149, %v151
    %v153 = vsel %vm141, %v131, %v134
    %v154 = vsel %vm144, %v140, 1326507024
    %v155 = vsel %vm143, %v137, %v154
    %v156 = vsel %vm142, %v153, %v155
    %v157 = vshll.u32 %v117, 8
    %v158 = vmul.u32.u64.compose %v157, %v156
    %v159 = vextract.low.u32 %v158
    %v160 = vextract.high.u32 %v158
    %v161 = vmul.u32.u64.compose %v157, %v152
    %v162 = vextract.low.u32 %v161
    %v163 = vextract.high.u32 %v161
    %v164 = vmul.u32 %v157, %v148
    %v165 = vadd.s32 %v160, %v162
    %vm166 = vc.u32 %v160, %v162
    %v167 = vadd.s32 %v163, 1
    %v168 = vsel %vm166, %v167, %v163
    %v169 = vadd.s32 %v164, %v168
    %v170 = vadd.s32 %v169, 536870912
    %v171 = vshrl.u32 %v170, 30
    %v172 = vshll.u32 %v171, 30
    %v173 = vsub.s32 %v169, %v172
    %vm174 = vcmp.lt.s32.totalorder %v173, 0
    %v175 = vsub.s32 0, %v173
    %v176 = vsel %vm174, %v175, %v173
    %v177 = vclz %v176
    %v178 = vsub.s32 %v177, 2
    %vm179 = vcmp.gt.s32.totalorder 0, %v178
    %v180 = vsel %vm179, 0, %v178
    %v181 = vsub.s32 32, %v180
    %v182 = vshll.u32 %v173, %v180
    %v183 = vshrl.u32 %v165, %v181
    %v184 = vor.u32 %v182, %v183
    %v185 = vsub.s32 4294967266, %v180
    %v186 = vadd.s32 %v185, 127
    %v187 = vshll.u32 %v186, 23
    %v188 = vor.u32 4788187, %v187
    %v189 = vand.u32 2147483647, %v188
    %v191 = vcvt.s32.f32 %v184
    %v192 = vmul.f32 %v191, %v189
    %v193 = vxor.u32 %v192, 2147483648
    %v194 = vsel %vm111, %v193, %v192
    %v195 = vsub.s32 4, %v171
    %v196 = vsel %vm111, %v195, %v171
    %v197 = vsel %vm110, %v93, %v194
    %v198 = vsel %vm110, 0, %v196
    %v199 = vcosq.f32.pop %v197
    %v200 = vsinq.f32.pop %v197
    %vm201 = vweird.f32 %v93
    %v202 = vadd.s32 %v198, 3
    %v203 = vand.u32 %v202, 3
    %vm204 = vcmp.lt.s32.totalorder %v203, 2
    %vm205 = vcmp.eq.s32.totalorder %v203, 0
    %v206 = vxor.u32 %v200, 2147483648
    %v207 = vsel %vm205, %v199, %v206
    %vm208 = vcmp.eq.s32.totalorder %v203, 2
    %v209 = vxor.u32 %v199, 2147483648
    %v210 = vsel %vm208, %v209, %v200
    %v211 = vsel %vm204, %v207, %v210
    %v212 = vsel %vm201, nan, %v211
    %v213 = vand.u32 2147483647, %v94
    %vm214 = vcmp.le.f32.partialorder %v213, 0.7853982
    %vm215 = vcmp.lt.s32.totalorder %v94, 0
    %v216 = vand.u32 %v94, 2139095040
    %v217 = vshrl.u32 %v216, 23
    %v218 = vsub.s32 %v217, 127
    %v219 = vand.u32 2147483647, %v94
    %v220 = vand.u32 %v219, 8388607
    %v221 = vor.u32 %v220, 8388608
    %v222 = vsub.s32 0, %v221
    %v223 = vadd.s32 %v218, 1
    %vm224 = vcmp.gt.s32.totalorder %v223, 0
    %v225 = vsel %vm224, %v223, 0
    %v226 = vshrl.u32 %v225, 5
    %v227 = vand.u32 %v225, 31
    %v228 = vsub.s32 32, %v227
    %v229 = vshrl.u32 683565275, %v228
    %v230 = vshll.u32 683565275, %v227
    %v231 = vshrl.u32 2475754826, %v228
    %v232 = vor.u32 %v230, %v231
    %v233 = vshll.u32 2475754826, %v227
    %v234 = vshrl.u32 2131351028, %v228
    %v235 = vor.u32 %v233, %v234
    %v236 = vshll.u32 2131351028, %v227
    %v237 = vshrl.u32 2102212464, %v228
    %v238 = vor.u32 %v236, %v237
    %v239 = vshll.u32 2102212464, %v227
    %v240 = vshrl.u32 920167782, %v228
    %v241 = vor.u32 %v239, %v240
    %v242 = vshll.u32 920167782, %v227
    %v243 = vshrl.u32 1326507024, %v228
    %v244 = vor.u32 %v242, %v243
    %vm245 = vcmp.lt.s32.totalorder %v226, 1
    %vm246 = vcmp.lt.s32.totalorder %v226, 2
    %vm247 = vcmp.lt.s32.totalorder %v226, 3
    %vm248 = vcmp.lt.s32.totalorder %v226, 4
    %v249 = vsel %vm245, %v229, %v232
    %v250 = vsel %vm248, %v238, 2102212464
    %v251 = vsel %vm247, %v235, %v250
    %v252 = vsel %vm246, %v249, %v251
    %v253 = vsel %vm245, %v232, %v235
    %v254 = vsel %vm248, %v241, 920167782
    %v255 = vsel %vm247, %v238, %v254
    %v256 = vsel %vm246, %v253, %v255
    %v257 = vsel %vm245, %v235, %v238
    %v258 = vsel %vm248, %v244, 1326507024
    %v259 = vsel %vm247, %v241, %v258
    %v260 = vsel %vm246, %v257, %v259
    %v261 = vshll.u32 %v221, 8
    %v262 = vmul.u32.u64.compose %v261, %v260
    %v263 = vextract.low.u32 %v262
    %v264 = vextract.high.u32 %v262
    %v265 = vmul.u32.u64.compose %v261, %v256
    %v266 = vextract.low.u32 %v265
    %v267 = vextract.high.u32 %v265
    %v268 = vmul.u32 %v261, %v252
    %v269 = vadd.s32 %v264, %v266
    %vm270 = vc.u32 %v264, %v266
    %v271 = vadd.s32 %v267, 1
    %v272 = vsel %vm270, %v271, %v267
    %v273 = vadd.s32 %v268, %v272
    %v274 = vadd.s32 %v273, 536870912
    %v275 = vshrl.u32 %v274, 30
    %v276 = vshll.u32 %v275, 30
    %v277 = vsub.s32 %v273, %v276
    %vm278 = vcmp.lt.s32.totalorder %v277, 0
    %v279 = vsub.s32 0, %v277
    %v280 = vsel %vm278, %v279, %v277
    %v281 = vclz %v280
    %v282 = vsub.s32 %v281, 2
    %vm283 = vcmp.gt.s32.totalorder 0, %v282
    %v284 = vsel %vm283, 0, %v282
    %v285 = vsub.s32 32, %v284
    %v286 = vshll.u32 %v277, %v284
    %v287 = vshrl.u32 %v269, %v285
    %v288 = vor.u32 %v286, %v287
    %v289 = vsub.s32 4294967266, %v284
    %v290 = vadd.s32 %v289, 127
    %v291 = vshll.u32 %v290, 23
    %v292 = vor.u32 4788187, %v291
    %v293 = vand.u32 2147483647, %v292
    %v295 = vcvt.s32.f32 %v288
    %v296 = vmul.f32 %v295, %v293
    %v297 = vxor.u32 %v296, 2147483648
    %v298 = vsel %vm215, %v297, %v296
    %v299 = vsub.s32 4, %v275
    %v300 = vsel %vm215, %v299, %v275
    %v301 = vsel %vm214, %v94, %v298
    %v302 = vsel %vm214, 0, %v300
    %v303 = vcosq.f32.pop %v301
    %v304 = vsinq.f32.pop %v301
    %vm305 = vweird.f32 %v94
    %v306 = vadd.s32 %v302, 3
    %v307 = vand.u32 %v306, 3
    %vm308 = vcmp.lt.s32.totalorder %v307, 2
    %vm309 = vcmp.eq.s32.totalorder %v307, 0
    %v310 = vxor.u32 %v304, 2147483648
    %v311 = vsel %vm309, %v303, %v310
    %vm312 = vcmp.eq.s32.totalorder %v307, 2
    %v313 = vxor.u32 %v303, 2147483648
    %v314 = vsel %vm312, %v313, %v304
    %v315 = vsel %vm308, %v311, %v314
    %v316 = vsel %vm305, nan, %v315
    %v317 = vadd.f32 %v107, %v212
    %v318 = vadd.f32 %v108, %v316
    %v319 = vpack.c.bf16 %v318, %v317
    %v320 = vld [vmem:[%s3] sm:$0xf]
    %v321 = vld [vmem:[%s3 + $0x4] sm:$0xf]
    %v322 = vld [vmem:[%s3 + $0x8] sm:$0xf]
    %v323 = vld [vmem:[%s3 + $0xc] sm:$0xf]
    %v324 = vld [vmem:[%s4] sm:$0x1]
    %v326 = vlaneseq
    %v327 = vshrl.u32 %v326, 7
    %v328 = vsub.s32 0, %v327
    %v329 = vrot.slane %v324, %v328
    %v335 = vunpack.c.l.b16 %v320
    %v336 = vunpack.c.l.b16 %v321
    %v337 = vunpack.c.l.b16 %v322
    %v338 = vunpack.c.l.b16 %v323
    %v339 = vpack.c.b16 %v336, %v335
    %v340 = vpack.c.b16 %v338, %v337
    %vm343 = vcmask 261120
    %v345 = vsel %vm343, %v319, 0
    %347 = vmatprep.subr.bf16.mxu0 0
    %348 = vmatpush1.bf16.msra.mxu0 0
    %349 = vmatprep.subr.bf16.mxu0 0
    %350 = vmatpush1.bf16.msra.mxu0 0
    %351 = vmatprep.subr.bf16.mxu0 0
    %352 = vmatpush1.bf16.msra.mxu0 0
    %353 = vmatprep.subr.bf16.mxu0 0
    %354 = vmatpush1.bf16.msra.mxu0 0
    %355 = vmatprep.subr.bf16.mxu0 0
    %356 = vmatpush1.bf16.msra.mxu0 0
    %357 = vmatprep.subr.bf16.mxu0 0
    %358 = vmatpush1.bf16.msra.mxu0 0
    %359 = vmatprep.subr.bf16.mxu0 0
    %360 = vmatpush1.bf16.msra.mxu0 %v340
    %361 = vmatprep.subr.bf16.mxu0 0
    %362 = vmatpush1.bf16.msra.mxu0 %v339
    %363 = vmatprep.subr.bf16.mxu0 0
    %364 = vmatpush2.bf16.msra.mxu0 0
    %365 = vmatprep.subr.bf16.mxu0 0
    %366 = vmatpush2.bf16.msra.mxu0 0
    %367 = vmatprep.subr.bf16.mxu0 0
    %368 = vmatpush2.bf16.msra.mxu0 0
    %369 = vmatprep.subr.bf16.mxu0 0
    %370 = vmatpush2.bf16.msra.mxu0 0
    %371 = vmatprep.subr.bf16.mxu0 0
    %372 = vmatpush2.bf16.msra.mxu0 0
    %373 = vmatprep.subr.bf16.mxu0 0
    %374 = vmatpush2.bf16.msra.mxu0 0
    %375 = vmatprep.subr.bf16.mxu0 0
    %376 = vmatpush2.bf16.msra.mxu0 0
    %377 = vmatprep.subr.bf16.mxu0 0
    %378 = vmatpush2.bf16.msra.mxu0 0
    %379 = vmatprep.mubr.bf16.mxu0 0
    %380 = vmatmul.mubr.bf16.gmra.mxu0 %v345
    %v381 = vpop.f32.mrf.mxu0
    %v382 = vadd.f32 %v329, %v381
    %v383 = vpop.f32.mrf.mxu0
    %v384 = vpop.f32.mrf.mxu0
    %v385 = vadd.f32 %v329, %v384
    %v386 = vpop.f32.mrf.mxu0
    %387 = vdwg.mxu0
    %v388 = vxor.u32 %v382, 2147483648
    %v389 = vxor.u32 %v385, 2147483648
    %v390 = vmul.f32 %v388, 1.442695
    %v391 = vpow.pop %v390
    %v392 = vmul.f32 %v389, 1.442695
    %v393 = vpow.pop %v392
    %v394 = vadd.f32 %v391, 1.0
    %v395 = vadd.f32 %v393, 1.0
    %v396 = vrcp.pop %v394
    %v397 = vmul.f32 1.0, %v396
    %v398 = vrcp.pop %v395
    %v399 = vmul.f32 1.0, %v398
    %v400 = vmul.f32 %v382, %v397
    %v401 = vmul.f32 %v385, %v399
    %v402 = vand.u32 2147483647, %v382
    %vm403 = vcmp.le.f32.partialorder %v402, 0.7853982
    %vm404 = vcmp.lt.s32.totalorder %v382, 0
    %v405 = vand.u32 %v382, 2139095040
    %v406 = vshrl.u32 %v405, 23
    %v407 = vsub.s32 %v406, 127
    %v408 = vand.u32 2147483647, %v382
    %v409 = vand.u32 %v408, 8388607
    %v410 = vor.u32 %v409, 8388608
    %v411 = vsub.s32 0, %v410
    %v412 = vadd.s32 %v407, 1
    %vm413 = vcmp.gt.s32.totalorder %v412, 0
    %v414 = vsel %vm413, %v412, 0
    %v415 = vshrl.u32 %v414, 5
    %v416 = vand.u32 %v414, 31
    %v417 = vsub.s32 32, %v416
    %v418 = vshrl.u32 683565275, %v417
    %v419 = vshll.u32 683565275, %v416
    %v420 = vshrl.u32 2475754826, %v417
    %v421 = vor.u32 %v419, %v420
    %v422 = vshll.u32 2475754826, %v416
    %v423 = vshrl.u32 2131351028, %v417
    %v424 = vor.u32 %v422, %v423
    %v425 = vshll.u32 2131351028, %v416
    %v426 = vshrl.u32 2102212464, %v417
    %v427 = vor.u32 %v425, %v426
    %v428 = vshll.u32 2102212464, %v416
    %v429 = vshrl.u32 920167782, %v417
    %v430 = vor.u32 %v428, %v429
    %v431 = vshll.u32 920167782, %v416
    %v432 = vshrl.u32 1326507024, %v417
    %v433 = vor.u32 %v431, %v432
    %vm434 = vcmp.lt.s32.totalorder %v415, 1
    %vm435 = vcmp.lt.s32.totalorder %v415, 2
    %vm436 = vcmp.lt.s32.totalorder %v415, 3
    %vm437 = vcmp.lt.s32.totalorder %v415, 4
    %v438 = vsel %vm434, %v418, %v421
    %v439 = vsel %vm437, %v427, 2102212464
    %v440 = vsel %vm436, %v424, %v439
    %v441 = vsel %vm435, %v438, %v440
    %v442 = vsel %vm434, %v421, %v424
    %v443 = vsel %vm437, %v430, 920167782
    %v444 = vsel %vm436, %v427, %v443
    %v445 = vsel %vm435, %v442, %v444
    %v446 = vsel %vm434, %v424, %v427
    %v447 = vsel %vm437, %v433, 1326507024
    %v448 = vsel %vm436, %v430, %v447
    %v449 = vsel %vm435, %v446, %v448
    %v450 = vshll.u32 %v410, 8
    %v451 = vmul.u32.u64.compose %v450, %v449
    %v452 = vextract.low.u32 %v451
    %v453 = vextract.high.u32 %v451
    %v454 = vmul.u32.u64.compose %v450, %v445
    %v455 = vextract.low.u32 %v454
    %v456 = vextract.high.u32 %v454
    %v457 = vmul.u32 %v450, %v441
    %v458 = vadd.s32 %v453, %v455
    %vm459 = vc.u32 %v453, %v455
    %v460 = vadd.s32 %v456, 1
    %v461 = vsel %vm459, %v460, %v456
    %v462 = vadd.s32 %v457, %v461
    %v463 = vadd.s32 %v462, 536870912
    %v464 = vshrl.u32 %v463, 30
    %v465 = vshll.u32 %v464, 30
    %v466 = vsub.s32 %v462, %v465
    %vm467 = vcmp.lt.s32.totalorder %v466, 0
    %v468 = vsub.s32 0, %v466
    %v469 = vsel %vm467, %v468, %v466
    %v470 = vclz %v469
    %v471 = vsub.s32 %v470, 2
    %vm472 = vcmp.gt.s32.totalorder 0, %v471
    %v473 = vsel %vm472, 0, %v471
    %v474 = vsub.s32 32, %v473
    %v475 = vshll.u32 %v466, %v473
    %v476 = vshrl.u32 %v458, %v474
    %v477 = vor.u32 %v475, %v476
    %v478 = vsub.s32 4294967266, %v473
    %v479 = vadd.s32 %v478, 127
    %v480 = vshll.u32 %v479, 23
    %v481 = vor.u32 4788187, %v480
    %v482 = vand.u32 2147483647, %v481
    %v484 = vcvt.s32.f32 %v477
    %v485 = vmul.f32 %v484, %v482
    %v486 = vxor.u32 %v485, 2147483648
    %v487 = vsel %vm404, %v486, %v485
    %v488 = vsub.s32 4, %v464
    %v489 = vsel %vm404, %v488, %v464
    %v490 = vsel %vm403, %v382, %v487
    %v491 = vsel %vm403, 0, %v489
    %v492 = vcosq.f32.pop %v490
    %v493 = vsinq.f32.pop %v490
    %vm494 = vweird.f32 %v382
    %v495 = vadd.s32 %v491, 3
    %v496 = vand.u32 %v495, 3
    %vm497 = vcmp.lt.s32.totalorder %v496, 2
    %vm498 = vcmp.eq.s32.totalorder %v496, 0
    %v499 = vxor.u32 %v493, 2147483648
    %v500 = vsel %vm498, %v492, %v499
    %vm501 = vcmp.eq.s32.totalorder %v496, 2
    %v502 = vxor.u32 %v492, 2147483648
    %v503 = vsel %vm501, %v502, %v493
    %v504 = vsel %vm497, %v500, %v503
    %v505 = vsel %vm494, nan, %v504
    %v506 = vand.u32 2147483647, %v385
    %vm507 = vcmp.le.f32.partialorder %v506, 0.7853982
    %vm508 = vcmp.lt.s32.totalorder %v385, 0
    %v509 = vand.u32 %v385, 2139095040
    %v510 = vshrl.u32 %v509, 23
    %v511 = vsub.s32 %v510, 127
    %v512 = vand.u32 2147483647, %v385
    %v513 = vand.u32 %v512, 8388607
    %v514 = vor.u32 %v513, 8388608
    %v515 = vsub.s32 0, %v514
    %v516 = vadd.s32 %v511, 1
    %vm517 = vcmp.gt.s32.totalorder %v516, 0
    %v518 = vsel %vm517, %v516, 0
    %v519 = vshrl.u32 %v518, 5
    %v520 = vand.u32 %v518, 31
    %v521 = vsub.s32 32, %v520
    %v522 = vshrl.u32 683565275, %v521
    %v523 = vshll.u32 683565275, %v520
    %v524 = vshrl.u32 2475754826, %v521
    %v525 = vor.u32 %v523, %v524
    %v526 = vshll.u32 2475754826, %v520
    %v527 = vshrl.u32 2131351028, %v521
    %v528 = vor.u32 %v526, %v527
    %v529 = vshll.u32 2131351028, %v520
    %v530 = vshrl.u32 2102212464, %v521
    %v531 = vor.u32 %v529, %v530
    %v532 = vshll.u32 2102212464, %v520
    %v533 = vshrl.u32 920167782, %v521
    %v534 = vor.u32 %v532, %v533
    %v535 = vshll.u32 920167782, %v520
    %v536 = vshrl.u32 1326507024, %v521
    %v537 = vor.u32 %v535, %v536
    %vm538 = vcmp.lt.s32.totalorder %v519, 1
    %vm539 = vcmp.lt.s32.totalorder %v519, 2
    %vm540 = vcmp.lt.s32.totalorder %v519, 3
    %vm541 = vcmp.lt.s32.totalorder %v519, 4
    %v542 = vsel %vm538, %v522, %v525
    %v543 = vsel %vm541, %v531, 2102212464
    %v544 = vsel %vm540, %v528, %v543
    %v545 = vsel %vm539, %v542, %v544
    %v546 = vsel %vm538, %v525, %v528
    %v547 = vsel %vm541, %v534, 920167782
    %v548 = vsel %vm540, %v531, %v547
    %v549 = vsel %vm539, %v546, %v548
    %v550 = vsel %vm538, %v528, %v531
    %v551 = vsel %vm541, %v537, 1326507024
    %v552 = vsel %vm540, %v534, %v551
    %v553 = vsel %vm539, %v550, %v552
    %v554 = vshll.u32 %v514, 8
    %v555 = vmul.u32.u64.compose %v554, %v553
    %v556 = vextract.low.u32 %v555
    %v557 = vextract.high.u32 %v555
    %v558 = vmul.u32.u64.compose %v554, %v549
    %v559 = vextract.low.u32 %v558
    %v560 = vextract.high.u32 %v558
    %v561 = vmul.u32 %v554, %v545
    %v562 = vadd.s32 %v557, %v559
    %vm563 = vc.u32 %v557, %v559
    %v564 = vadd.s32 %v560, 1
    %v565 = vsel %vm563, %v564, %v560
    %v566 = vadd.s32 %v561, %v565
    %v567 = vadd.s32 %v566, 536870912
    %v568 = vshrl.u32 %v567, 30
    %v569 = vshll.u32 %v568, 30
    %v570 = vsub.s32 %v566, %v569
    %vm571 = vcmp.lt.s32.totalorder %v570, 0
    %v572 = vsub.s32 0, %v570
    %v573 = vsel %vm571, %v572, %v570
    %v574 = vclz %v573
    %v575 = vsub.s32 %v574, 2
    %vm576 = vcmp.gt.s32.totalorder 0, %v575
    %v577 = vsel %vm576, 0, %v575
    %v578 = vsub.s32 32, %v577
    %v579 = vshll.u32 %v570, %v577
    %v580 = vshrl.u32 %v562, %v578
    %v581 = vor.u32 %v579, %v580
    %v582 = vsub.s32 4294967266, %v577
    %v583 = vadd.s32 %v582, 127
    %v584 = vshll.u32 %v583, 23
    %v585 = vor.u32 4788187, %v584
    %v586 = vand.u32 2147483647, %v585
    %v588 = vcvt.s32.f32 %v581
    %v589 = vmul.f32 %v588, %v586
    %v590 = vxor.u32 %v589, 2147483648
    %v591 = vsel %vm508, %v590, %v589
    %v592 = vsub.s32 4, %v568
    %v593 = vsel %vm508, %v592, %v568
    %v594 = vsel %vm507, %v385, %v591
    %v595 = vsel %vm507, 0, %v593
    %v596 = vcosq.f32.pop %v594
    %v597 = vsinq.f32.pop %v594
    %vm598 = vweird.f32 %v385
    %v599 = vadd.s32 %v595, 3
    %v600 = vand.u32 %v599, 3
    %vm601 = vcmp.lt.s32.totalorder %v600, 2
    %vm602 = vcmp.eq.s32.totalorder %v600, 0
    %v603 = vxor.u32 %v597, 2147483648
    %v604 = vsel %vm602, %v596, %v603
    %vm605 = vcmp.eq.s32.totalorder %v600, 2
    %v606 = vxor.u32 %v596, 2147483648
    %v607 = vsel %vm605, %v606, %v597
    %v608 = vsel %vm601, %v604, %v607
    %v609 = vsel %vm598, nan, %v608
    %v610 = vadd.f32 %v400, %v505
    %v611 = vadd.f32 %v401, %v609
    %v612 = vpack.c.bf16 %v611, %v610
    %v614 = vunpack.c.l.b16 %v612
    %v615 = vunpack.c.h.b16 %v612
    %v616 = vpack.c.b16 %v614, %v614
    %v617 = vpack.c.b16 %v615, %v615
    %vm620 = vcmask 257024
    %621 = vst.msk [vmem:[#allocation2] sm:$0xf] %vm620, %v616
    %622 = vst.msk [vmem:[#allocation2 + $0x4] sm:$0xf] %vm620, %v617
    %v623 = vld [vmem:[#allocation3] sm:$0xf]
    %v624 = vld [vmem:[#allocation3 + $0x4] sm:$0xf]
    %v625 = vld [vmem:[#allocation3 + $0x8] sm:$0xf]
    %v626 = vld [vmem:[#allocation3 + $0xc] sm:$0xf]
    %v627 = vld [vmem:[%s6] sm:$0x1]
    %v629 = vlaneseq
    %v630 = vshrl.u32 %v629, 7
    %v631 = vsub.s32 0, %v630
    %v632 = vrot.slane %v627, %v631
    %v638 = vunpack.c.l.b16 %v623
    %v639 = vunpack.c.l.b16 %v624
    %v640 = vunpack.c.l.b16 %v625
    %v641 = vunpack.c.l.b16 %v626
    %v642 = vpack.c.b16 %v639, %v638
    %v643 = vpack.c.b16 %v641, %v640
    %v647 = vsel %vm343, %v612, 0
    %649 = vmatprep.subr.bf16.mxu0 0
    %650 = vmatpush1.bf16.msra.mxu0 0
    %651 = vmatprep.subr.bf16.mxu0 0
    %652 = vmatpush1.bf16.msra.mxu0 0
    %653 = vmatprep.subr.bf16.mxu0 0
    %654 = vmatpush1.bf16.msra.mxu0 0
    %655 = vmatprep.subr.bf16.mxu0 0
    %656 = vmatpush1.bf16.msra.mxu0 0
    %657 = vmatprep.subr.bf16.mxu0 0
    %658 = vmatpush1.bf16.msra.mxu0 0
    %659 = vmatprep.subr.bf16.mxu0 0
    %660 = vmatpush1.bf16.msra.mxu0 0
    %661 = vmatprep.subr.bf16.mxu0 0
    %662 = vmatpush1.bf16.msra.mxu0 %v643
    %663 = vmatprep.subr.bf16.mxu0 0
    %664 = vmatpush1.bf16.msra.mxu0 %v642
    %665 = vmatprep.subr.bf16.mxu0 0
    %666 = vmatpush2.bf16.msra.mxu0 0
    %667 = vmatprep.subr.bf16.mxu0 0
    %668 = vmatpush2.bf16.msra.mxu0 0
    %669 = vmatprep.subr.bf16.mxu0 0
    %670 = vmatpush2.bf16.msra.mxu0 0
    %671 = vmatprep.subr.bf16.mxu0 0
    %672 = vmatpush2.bf16.msra.mxu0 0
    %673 = vmatprep.subr.bf16.mxu0 0
    %674 = vmatpush2.bf16.msra.mxu0 0
    %675 = vmatprep.subr.bf16.mxu0 0
    %676 = vmatpush2.bf16.msra.mxu0 0
    %677 = vmatprep.subr.bf16.mxu0 0
    %678 = vmatpush2.bf16.msra.mxu0 0
    %679 = vmatprep.subr.bf16.mxu0 0
    %680 = vmatpush2.bf16.msra.mxu0 0
    %681 = vmatprep.mubr.bf16.mxu0 0
    %682 = vmatmul.mubr.bf16.gmra.mxu0 %v647
    %v683 = vpop.f32.mrf.mxu0
    %v684 = vadd.f32 %v632, %v683
    %v685 = vpop.f32.mrf.mxu0
    %v686 = vpop.f32.mrf.mxu0
    %v687 = vadd.f32 %v632, %v686
    %v688 = vpop.f32.mrf.mxu0
    %689 = vdwg.mxu0
    %v690 = vxor.u32 %v684, 2147483648
    %v691 = vxor.u32 %v687, 2147483648
    %v692 = vmul.f32 %v690, 1.442695
    %v693 = vpow.pop %v692
    %v694 = vmul.f32 %v691, 1.442695
    %v695 = vpow.pop %v694
    %v696 = vadd.f32 %v693, 1.0
    %v697 = vadd.f32 %v695, 1.0
    %v698 = vrcp.pop %v696
    %v699 = vmul.f32 1.0, %v698
    %v700 = vrcp.pop %v697
    %v701 = vmul.f32 1.0, %v700
    %v702 = vmul.f32 %v684, %v699
    %v703 = vmul.f32 %v687, %v701
    %v704 = vand.u32 2147483647, %v684
    %vm705 = vcmp.le.f32.partialorder %v704, 0.7853982
    %vm706 = vcmp.lt.s32.totalorder %v684, 0
    %v707 = vand.u32 %v684, 2139095040
    %v708 = vshrl.u32 %v707, 23
    %v709 = vsub.s32 %v708, 127
    %v710 = vand.u32 2147483647, %v684
    %v711 = vand.u32 %v710, 8388607
    %v712 = vor.u32 %v711, 8388608
    %v713 = vsub.s32 0, %v712
    %v714 = vadd.s32 %v709, 1
    %vm715 = vcmp.gt.s32.totalorder %v714, 0
    %v716 = vsel %vm715, %v714, 0
    %v717 = vshrl.u32 %v716, 5
    %v718 = vand.u32 %v716, 31
    %v719 = vsub.s32 32, %v718
    %v720 = vshrl.u32 683565275, %v719
    %v721 = vshll.u32 683565275, %v718
    %v722 = vshrl.u32 2475754826, %v719
    %v723 = vor.u32 %v721, %v722
    %v724 = vshll.u32 2475754826, %v718
    %v725 = vshrl.u32 2131351028, %v719
    %v726 = vor.u32 %v724, %v725
    %v727 = vshll.u32 2131351028, %v718
    %v728 = vshrl.u32 2102212464, %v719
    %v729 = vor.u32 %v727, %v728
    %v730 = vshll.u32 2102212464, %v718
    %v731 = vshrl.u32 920167782, %v719
    %v732 = vor.u32 %v730, %v731
    %v733 = vshll.u32 920167782, %v718
    %v734 = vshrl.u32 1326507024, %v719
    %v735 = vor.u32 %v733, %v734
    %vm736 = vcmp.lt.s32.totalorder %v717, 1
    %vm737 = vcmp.lt.s32.totalorder %v717, 2
    %vm738 = vcmp.lt.s32.totalorder %v717, 3
    %vm739 = vcmp.lt.s32.totalorder %v717, 4
    %v740 = vsel %vm736, %v720, %v723
    %v741 = vsel %vm739, %v729, 2102212464
    %v742 = vsel %vm738, %v726, %v741
    %v743 = vsel %vm737, %v740, %v742
    %v744 = vsel %vm736, %v723, %v726
    %v745 = vsel %vm739, %v732, 920167782
    %v746 = vsel %vm738, %v729, %v745
    %v747 = vsel %vm737, %v744, %v746
    %v748 = vsel %vm736, %v726, %v729
    %v749 = vsel %vm739, %v735, 1326507024
    %v750 = vsel %vm738, %v732, %v749
    %v751 = vsel %vm737, %v748, %v750
    %v752 = vshll.u32 %v712, 8
    %v753 = vmul.u32.u64.compose %v752, %v751
    %v754 = vextract.low.u32 %v753
    %v755 = vextract.high.u32 %v753
    %v756 = vmul.u32.u64.compose %v752, %v747
    %v757 = vextract.low.u32 %v756
    %v758 = vextract.high.u32 %v756
    %v759 = vmul.u32 %v752, %v743
    %v760 = vadd.s32 %v755, %v757
    %vm761 = vc.u32 %v755, %v757
    %v762 = vadd.s32 %v758, 1
    %v763 = vsel %vm761, %v762, %v758
    %v764 = vadd.s32 %v759, %v763
    %v765 = vadd.s32 %v764, 536870912
    %v766 = vshrl.u32 %v765, 30
    %v767 = vshll.u32 %v766, 30
    %v768 = vsub.s32 %v764, %v767
    %vm769 = vcmp.lt.s32.totalorder %v768, 0
    %v770 = vsub.s32 0, %v768
    %v771 = vsel %vm769, %v770, %v768
    %v772 = vclz %v771
    %v773 = vsub.s32 %v772, 2
    %vm774 = vcmp.gt.s32.totalorder 0, %v773
    %v775 = vsel %vm774, 0, %v773
    %v776 = vsub.s32 32, %v775
    %v777 = vshll.u32 %v768, %v775
    %v778 = vshrl.u32 %v760, %v776
    %v779 = vor.u32 %v777, %v778
    %v780 = vsub.s32 4294967266, %v775
    %v781 = vadd.s32 %v780, 127
    %v782 = vshll.u32 %v781, 23
    %v783 = vor.u32 4788187, %v782
    %v784 = vand.u32 2147483647, %v783
    %v786 = vcvt.s32.f32 %v779
    %v787 = vmul.f32 %v786, %v784
    %v788 = vxor.u32 %v787, 2147483648
    %v789 = vsel %vm706, %v788, %v787
    %v790 = vsub.s32 4, %v766
    %v791 = vsel %vm706, %v790, %v766
    %v792 = vsel %vm705, %v684, %v789
    %v793 = vsel %vm705, 0, %v791
    %v794 = vcosq.f32.pop %v792
    %v795 = vsinq.f32.pop %v792
    %vm796 = vweird.f32 %v684
    %v797 = vadd.s32 %v793, 3
    %v798 = vand.u32 %v797, 3
    %vm799 = vcmp.lt.s32.totalorder %v798, 2
    %vm800 = vcmp.eq.s32.totalorder %v798, 0
    %v801 = vxor.u32 %v795, 2147483648
    %v802 = vsel %vm800, %v794, %v801
    %vm803 = vcmp.eq.s32.totalorder %v798, 2
    %v804 = vxor.u32 %v794, 2147483648
    %v805 = vsel %vm803, %v804, %v795
    %v806 = vsel %vm799, %v802, %v805
    %v807 = vsel %vm796, nan, %v806
    %v808 = vand.u32 2147483647, %v687
    %vm809 = vcmp.le.f32.partialorder %v808, 0.7853982
    %vm810 = vcmp.lt.s32.totalorder %v687, 0
    %v811 = vand.u32 %v687, 2139095040
    %v812 = vshrl.u32 %v811, 23
    %v813 = vsub.s32 %v812, 127
    %v814 = vand.u32 2147483647, %v687
    %v815 = vand.u32 %v814, 8388607
    %v816 = vor.u32 %v815, 8388608
    %v817 = vsub.s32 0, %v816
    %v818 = vadd.s32 %v813, 1
    %vm819 = vcmp.gt.s32.totalorder %v818, 0
    %v820 = vsel %vm819, %v818, 0
    %v821 = vshrl.u32 %v820, 5
    %v822 = vand.u32 %v820, 31
    %v823 = vsub.s32 32, %v822
    %v824 = vshrl.u32 683565275, %v823
    %v825 = vshll.u32 683565275, %v822
    %v826 = vshrl.u32 2475754826, %v823
    %v827 = vor.u32 %v825, %v826
    %v828 = vshll.u32 2475754826, %v822
    %v829 = vshrl.u32 2131351028, %v823
    %v830 = vor.u32 %v828, %v829
    %v831 = vshll.u32 2131351028, %v822
    %v832 = vshrl.u32 2102212464, %v823
    %v833 = vor.u32 %v831, %v832
    %v834 = vshll.u32 2102212464, %v822
    %v835 = vshrl.u32 920167782, %v823
    %v836 = vor.u32 %v834, %v835
    %v837 = vshll.u32 920167782, %v822
    %v838 = vshrl.u32 1326507024, %v823
    %v839 = vor.u32 %v837, %v838
    %vm840 = vcmp.lt.s32.totalorder %v821, 1
    %vm841 = vcmp.lt.s32.totalorder %v821, 2
    %vm842 = vcmp.lt.s32.totalorder %v821, 3
    %vm843 = vcmp.lt.s32.totalorder %v821, 4
    %v844 = vsel %vm840, %v824, %v827
    %v845 = vsel %vm843, %v833, 2102212464
    %v846 = vsel %vm842, %v830, %v845
    %v847 = vsel %vm841, %v844, %v846
    %v848 = vsel %vm840, %v827, %v830
    %v849 = vsel %vm843, %v836, 920167782
    %v850 = vsel %vm842, %v833, %v849
    %v851 = vsel %vm841, %v848, %v850
    %v852 = vsel %vm840, %v830, %v833
    %v853 = vsel %vm843, %v839, 1326507024
    %v854 = vsel %vm842, %v836, %v853
    %v855 = vsel %vm841, %v852, %v854
    %v856 = vshll.u32 %v816, 8
    %v857 = vmul.u32.u64.compose %v856, %v855
    %v858 = vextract.low.u32 %v857
    %v859 = vextract.high.u32 %v857
    %v860 = vmul.u32.u64.compose %v856, %v851
    %v861 = vextract.low.u32 %v860
    %v862 = vextract.high.u32 %v860
    %v863 = vmul.u32 %v856, %v847
    %v864 = vadd.s32 %v859, %v861
    %vm865 = vc.u32 %v859, %v861
    %v866 = vadd.s32 %v862, 1
    %v867 = vsel %vm865, %v866, %v862
    %v868 = vadd.s32 %v863, %v867
    %v869 = vadd.s32 %v868, 536870912
    %v870 = vshrl.u32 %v869, 30
    %v871 = vshll.u32 %v870, 30
    %v872 = vsub.s32 %v868, %v871
    %vm873 = vcmp.lt.s32.totalorder %v872, 0
    %v874 = vsub.s32 0, %v872
    %v875 = vsel %vm873, %v874, %v872
    %v876 = vclz %v875
    %v877 = vsub.s32 %v876, 2
    %vm878 = vcmp.gt.s32.totalorder 0, %v877
    %v879 = vsel %vm878, 0, %v877
    %v880 = vsub.s32 32, %v879
    %v881 = vshll.u32 %v872, %v879
    %v882 = vshrl.u32 %v864, %v880
    %v883 = vor.u32 %v881, %v882
    %v884 = vsub.s32 4294967266, %v879
    %v885 = vadd.s32 %v884, 127
    %v886 = vshll.u32 %v885, 23
    %v887 = vor.u32 4788187, %v886
    %v888 = vand.u32 2147483647, %v887
    %v890 = vcvt.s32.f32 %v883
    %v891 = vmul.f32 %v890, %v888
    %v892 = vxor.u32 %v891, 2147483648
    %v893 = vsel %vm810, %v892, %v891
    %v894 = vsub.s32 4, %v870
    %v895 = vsel %vm810, %v894, %v870
    %v896 = vsel %vm809, %v687, %v893
    %v897 = vsel %vm809, 0, %v895
    %v898 = vcosq.f32.pop %v896
    %v899 = vsinq.f32.pop %v896
    %vm900 = vweird.f32 %v687
    %v901 = vadd.s32 %v897, 3
    %v902 = vand.u32 %v901, 3
    %vm903 = vcmp.lt.s32.totalorder %v902, 2
    %vm904 = vcmp.eq.s32.totalorder %v902, 0
    %v905 = vxor.u32 %v899, 2147483648
    %v906 = vsel %vm904, %v898, %v905
    %vm907 = vcmp.eq.s32.totalorder %v902, 2
    %v908 = vxor.u32 %v898, 2147483648
    %v909 = vsel %vm907, %v908, %v899
    %v910 = vsel %vm903, %v906, %v909
    %v911 = vsel %vm900, nan, %v910
    %v912 = vadd.f32 %v702, %v807
    %v913 = vadd.f32 %v703, %v911
    %v914 = vpack.c.bf16 %v913, %v912
    %v916 = vunpack.c.l.b16 %v914
    %v917 = vunpack.c.h.b16 %v914
    %v918 = vpack.c.b16 %v916, %v916
    %v919 = vpack.c.b16 %v917, %v917
    %920 = vrot.lane.b32.xlu0 %v918, 32
    %v921 = vpop.permute.xlu0 %920
    %922 = vrot.lane.b32.xlu0 %v919, 32
    %v923 = vpop.permute.xlu0 %922
    %vm926 = vcmask 519424
    %927 = vst.msk [vmem:[#allocation2] sm:$0xf] %vm926, %v921
    %928 = vst.msk [vmem:[#allocation2 + $0x4] sm:$0xf] %vm926, %v923
    %v929 = vld [vmem:[%s7] sm:$0x7]
    %v930 = vld [vmem:[#allocation2] sm:$0xf]
    %v931 = vld [vmem:[#allocation2 + $0x4] sm:$0xf]
    %v932 = vld [vmem:[%s8] sm:$0x3f]
    %934 = vset.pattern.permute.xlu0 0
    %935 = vperm.xlu0 %934, %v932
    %v936 = vpop.permute.xlu0 %935
    %v940 = vunpack.c.l.b16 %v930
    %v941 = vunpack.c.l.b16 %v931
    %v942 = vpack.c.b16 %v941, %v940
    %vm943 = vcmask 523264
    %v945 = vsel %vm943, %v929, 0
    %v948 = vsel %vm943, %v942, 0
    %950 = vmatprep.subr.bf16.mxu0 0
    %951 = vmatpush1.bf16.xpose.msra.mxu0 0
    %952 = vmatprep.subr.bf16.mxu0 0
    %953 = vmatpush1.bf16.xpose.msra.mxu0 0
    %954 = vmatprep.subr.bf16.mxu0 0
    %955 = vmatpush1.bf16.xpose.msra.mxu0 0
    %956 = vmatprep.subr.bf16.mxu0 0
    %957 = vmatpush1.bf16.xpose.msra.mxu0 0
    %958 = vmatprep.subr.bf16.mxu0 0
    %959 = vmatpush1.bf16.xpose.msra.mxu0 0
    %960 = vmatprep.subr.bf16.mxu0 0
    %961 = vmatpush1.bf16.xpose.msra.mxu0 0
    %962 = vmatprep.subr.bf16.mxu0 0
    %963 = vmatpush1.bf16.xpose.msra.mxu0 0
    %964 = vmatprep.subr.bf16.mxu0 0
    %965 = vmatpush1.bf16.xpose.msra.mxu0 %v948
    %966 = vmatprep.subr.bf16.mxu0 0
    %967 = vmatpush2.bf16.xpose.msra.mxu0 0
    %968 = vmatprep.subr.bf16.mxu0 0
    %969 = vmatpush2.bf16.xpose.msra.mxu0 0
    %970 = vmatprep.subr.bf16.mxu0 0
    %971 = vmatpush2.bf16.xpose.msra.mxu0 0
    %972 = vmatprep.subr.bf16.mxu0 0
    %973 = vmatpush2.bf16.xpose.msra.mxu0 0
    %974 = vmatprep.subr.bf16.mxu0 0
    %975 = vmatpush2.bf16.xpose.msra.mxu0 0
    %976 = vmatprep.subr.bf16.mxu0 0
    %977 = vmatpush2.bf16.xpose.msra.mxu0 0
    %978 = vmatprep.subr.bf16.mxu0 0
    %979 = vmatpush2.bf16.xpose.msra.mxu0 0
    %980 = vmatprep.subr.bf16.mxu0 0
    %981 = vmatpush2.bf16.xpose.msra.mxu0 0
    %982 = vmatprep.mubr.bf16.mxu0 0
    %983 = vmatmul.mubr.bf16.gmra.mxu0 %v945
    %v984 = vpop.f32.mrf.mxu0
    %v985 = vadd.f32 %v936, %v984
    %v986 = vpop.f32.mrf.mxu0
    %v987 = vpop.f32.mrf.mxu0
    %v988 = vpop.f32.mrf.mxu0
    %989 = vdwg.mxu0
    %vm990 = vcmask 128000
    %991 = vst.msk [vmem:[#allocation6] sm:$0x3f] %vm990, %v985
    // Predicated region
    $region42: #{tpu_custom_call.1} parent=1 // pred_check
      _
    $region43: #{tpu_custom_call.1} parent=1 // pred_check_branch
      %993 = sbr.rel (0) target = $region45
    $region44: #{tpu_custom_call.1} parent=1 // pred_region
      %s995 = ssub.s32 128, 128
      %996 = vsyncadd [#allocation5], %s995
      %s998 = sshll.u32 [#allocation6], 4
      %s999 = int_to_ptr.vmem [resolvable:$true] %s998
      %1001 = dma.vmem_to_hbm [thread:$0]  %s999, 128, %s9, [#allocation5]
    $region45: #{tpu_custom_call.1} parent=1 // pred_fallthru
      _
    // Predicated region
    $region46: #{tpu_custom_call.1} parent=1 // pred_check
      _
    $region47: #{tpu_custom_call.1} parent=1 // pred_check_branch
      %1003 = sbr.rel (0) target = $region49
    $region48: #{tpu_custom_call.1} parent=1 // pred_region
      %1004 = dma.done [#allocation5], 128
    $region49: #{tpu_custom_call.1} parent=1 // pred_fallthru
      _
    %1005 = vsyncpa [#allocation4], 1
    %1006 = vsyncpa [#allocation5], 1

// kernel: tpu_custom_call.1
$region0: #{tpu_custom_call.1}
  #allocation0 [shape = 'u32[]', space=smem, size = 0x4, offset = 0x4, fixed_abs, tag = 'smem constant byte address 0x4 - core index']
  #allocation1 [shape = 'u32[144,128]{1,0:T(1,128)}', space=vmem, size = 0x12000, scoped, tag = 'internal scratch']
  #allocation2 [shape = 'bf16[16,64]{1,0:T(8,128)(2,1)}', space=vmem, size = 0x1000, scoped, tag = 'scratch operand']
  %s0 = inlined_call_operand.vmem [shape: bf16[16,2], index: 0, kind: input, shape index: {}]
  %s1 = inlined_call_operand.vmem [shape: bf16[2,32], index: 1, kind: input, shape index: {}]
  %s2 = inlined_call_operand.vmem [shape: f32[1,32], index: 2, kind: input, shape index: {}]
  %s3 = inlined_call_operand.vmem [shape: bf16[32,32], index: 3, kind: input, shape index: {}]
  %s4 = inlined_call_operand.vmem [shape: f32[1,32], index: 4, kind: input, shape index: {}]
  %s5 = inlined_call_operand.hbm [shape: bf16[32,32], index: 5, kind: input, shape index: {}]
  %s6 = inlined_call_operand.vmem [shape: f32[1,32], index: 6, kind: input, shape index: {}]
  %s7 = inlined_call_operand.vmem [shape: bf16[6,64], index: 7, kind: input, shape index: {}]
  %s8 = inlined_call_operand.vmem [shape: f32[6,1], index: 8, kind: input, shape index: {}]
  %s9 = inlined_call_operand.hbm [shape: f32[6,16], index: 9, kind: output, shape index: {}]
  %s10 = sld [smem:[#allocation0]]
  $region50: #{tpu_custom_call.1} parent=0
    _
  %s12 = ssub.s32 1, %s10
  %s13 = scalar_select 0, %s12, %s10
  $region1: #{tpu_custom_call.1} parent=0
    #allocation3 [shape = 'u8[8192]{0}', space=vmem, size = 0x2000, scoped, tag = 'input window, operand 5, single buffered']
    #allocation4 [shape = 's32[1]{0}', space=sflag, size = 0x4, scoped, tag = 'scoped memory for tpu_custom_call.1']
    #allocation5 [shape = 's32[1]{0}', space=sflag, size = 0x4, scoped, tag = 'scoped memory for tpu_custom_call.1']
    #allocation6 [shape = 'u8[4096]{0}', space=vmem, size = 0x1000, scoped, tag = 'output window, operand 0, single buffered']
    %14 = vsyncpa [#allocation4], 0
    %15 = vsyncpa [#allocation5], 0
    // Predicated region
    $region2: #{tpu_custom_call.1} parent=1 // pred_check
      _
    $region3: #{tpu_custom_call.1} parent=1 // pred_check_branch
      %17 = sbr.rel (0) target = $region5
    $region4: #{tpu_custom_call.1} parent=1 // pred_region
      _
    $region5: #{tpu_custom_call.1} parent=1 // pred_fallthru
      _
    // Predicated region
    $region6: #{tpu_custom_call.1} parent=1 // pred_check
      _
    $region7: #{tpu_custom_call.1} parent=1 // pred_check_branch
      %19 = sbr.rel (0) target = $region9
    $region8: #{tpu_custom_call.1} parent=1 // pred_region
      _
    $region9: #{tpu_custom_call.1} parent=1 // pred_fallthru
      _
    // Predicated region
    $region10: #{tpu_custom_call.1} parent=1 // pred_check
      _
    $region11: #{tpu_custom_call.1} parent=1 // pred_check_branch
      %21 = sbr.rel (0) target = $region13
    $region12: #{tpu_custom_call.1} parent=1 // pred_region
      _
    $region13: #{tpu_custom_call.1} parent=1 // pred_fallthru
      _
    // Predicated region
    $region14: #{tpu_custom_call.1} parent=1 // pred_check
      _
    $region15: #{tpu_custom_call.1} parent=1 // pred_check_branch
      %23 = sbr.rel (0) target = $region17
    $region16: #{tpu_custom_call.1} parent=1 // pred_region
      _
    $region17: #{tpu_custom_call.1} parent=1 // pred_fallthru
      _
    // Predicated region
    $region18: #{tpu_custom_call.1} parent=1 // pred_check
      _
    $region19: #{tpu_custom_call.1} parent=1 // pred_check_branch
      %25 = sbr.rel (0) target = $region21
    $region20: #{tpu_custom_call.1} parent=1 // pred_region
      _
    $region21: #{tpu_custom_call.1} parent=1 // pred_fallthru
      _
    // Predicated region
    $region22: #{tpu_custom_call.1} parent=1 // pred_check
      _
    $region23: #{tpu_custom_call.1} parent=1 // pred_check_branch
      %27 = sbr.rel (0) target = $region25
    $region24: #{tpu_custom_call.1} parent=1 // pred_region
      %s29 = ssub.s32 256, 256
      %30 = vsyncadd [#allocation4], %s29
      %s31 = sshll.u32 [#allocation3], 4
      %s32 = int_to_ptr.vmem [resolvable:$true] %s31
      %37 = dma.hbm_to_vmem [thread:$0]  %s5, 256, %s32, [#allocation4], 64, 64, 4
    $region25: #{tpu_custom_call.1} parent=1 // pred_fallthru
      _
    // Predicated region
    $region26: #{tpu_custom_call.1} parent=1 // pred_check
      _
    $region27: #{tpu_custom_call.1} parent=1 // pred_check_branch
      %39 = sbr.rel (0) target = $region29
    $region28: #{tpu_custom_call.1} parent=1 // pred_region
      _
    $region29: #{tpu_custom_call.1} parent=1 // pred_fallthru
      _
    // Predicated region
    $region30: #{tpu_custom_call.1} parent=1 // pred_check
      _
    $region31: #{tpu_custom_call.1} parent=1 // pred_check_branch
      %41 = sbr.rel (0) target = $region33
    $region32: #{tpu_custom_call.1} parent=1 // pred_region
      _
    $region33: #{tpu_custom_call.1} parent=1 // pred_fallthru
      _
    // Predicated region
    $region34: #{tpu_custom_call.1} parent=1 // pred_check
      _
    $region35: #{tpu_custom_call.1} parent=1 // pred_check_branch
      %43 = sbr.rel (0) target = $region37
    $region36: #{tpu_custom_call.1} parent=1 // pred_region
      _
    $region37: #{tpu_custom_call.1} parent=1 // pred_fallthru
      _
    // Predicated region
    $region38: #{tpu_custom_call.1} parent=1 // pred_check
      _
    $region39: #{tpu_custom_call.1} parent=1 // pred_check_branch
      %45 = sbr.rel (0) target = $region41
    $region40: #{tpu_custom_call.1} parent=1 // pred_region
      %46 = dma.done [#allocation4], 256
    $region41: #{tpu_custom_call.1} parent=1 // pred_fallthru
      _
    %v48 = vld [vmem:[%s2] sm:$0x1]
    %v49 = vld [vmem:[%s0] sm:$0xf]
    %v50 = vld [vmem:[%s0 + $0x4] sm:$0xf]
    %v51 = vunpack.c.l.bf16 %v49
    %v52 = vunpack.c.l.bf16 %v50
    %v53 = vld [vmem:[%s1] sm:$0x1]
    %v54 = vunpack.c.l.bf16 %v53
    %56 = vset.pattern.permute.xlu0 0
    %57 = vperm.xlu0 %56, %v51
    %v58 = vpop.permute.xlu0 %57
    %61 = vset.pattern.permute.xlu0 0
    %62 = vperm.xlu0 %61, %v52
    %v63 = vpop.permute.xlu0 %62
    %v65 = vlaneseq
    %v66 = vshrl.u32 %v65, 7
    %v67 = vsub.s32 0, %v66
    %v68 = vrot.slane %v54, %v67
    %v69 = vmul.f32 %v58, %v68
    %v70 = vmul.f32 %v63, %v68
    %v72 = vlaneseq
    %v73 = vshrl.u32 %v72, 7
    %v74 = vsub.s32 0, %v73
    %v75 = vrot.slane %v48, %v74
    %v77 = vadd.f32 %v75, %v69
    %v78 = vadd.f32 %v75, %v70
    %79 = vset.pattern.permute.xlu0 1
    %80 = vperm.xlu0 %79, %v51
    %v81 = vpop.permute.xlu0 %80
    %83 = vset.pattern.permute.xlu0 1
    %84 = vperm.xlu0 %83, %v52
    %v85 = vpop.permute.xlu0 %84
    %v87 = vlaneseq
    %v88 = vshrl.u32 %v87, 7
    %v89 = vsub.s32 1, %v88
    %v90 = vrot.slane %v54, %v89
    %v91 = vmul.f32 %v81, %v90
    %v92 = vmul.f32 %v85, %v90
    %v93 = vadd.f32 %v77, %v91
    %v94 = vadd.f32 %v78, %v92
    %v95 = vxor.u32 %v93, 2147483648
    %v96 = vxor.u32 %v94, 2147483648
    %v97 = vmul.f32 %v95, 1.442695
    %v98 = vpow.pop %v97
    %v99 = vmul.f32 %v96, 1.442695
    %v100 = vpow.pop %v99
    %v101 = vadd.f32 %v98, 1.0
    %v102 = vadd.f32 %v100, 1.0
    %v103 = vrcp.pop %v101
    %v104 = vmul.f32 1.0, %v103
    %v105 = vrcp.pop %v102
    %v106 = vmul.f32 1.0, %v105
    %v107 = vmul.f32 %v93, %v104
    %v108 = vmul.f32 %v94, %v106
    %v109 = vand.u32 2147483647, %v93
    %vm110 = vcmp.le.f32.partialorder %v109, 0.7853982
    %vm111 = vcmp.lt.s32.totalorder %v93, 0
    %v112 = vand.u32 %v93, 2139095040
    %v113 = vshrl.u32 %v112, 23
    %v114 = vsub.s32 %v113, 127
    %v115 = vand.u32 2147483647, %v93
    %v116 = vand.u32 %v115, 8388607
    %v117 = vor.u32 %v116, 8388608
    %v118 = vsub.s32 0, %v117
    %v119 = vadd.s32 %v114, 1
    %vm120 = vcmp.gt.s32.totalorder %v119, 0
    %v121 = vsel %vm120, %v119, 0
    %v122 = vshrl.u32 %v121, 5
    %v123 = vand.u32 %v121, 31
    %v124 = vsub.s32 32, %v123
    %v125 = vshrl.u32 683565275, %v124
    %v126 = vshll.u32 683565275, %v123
    %v127 = vshrl.u32 2475754826, %v124
    %v128 = vor.u32 %v126, %v127
    %v129 = vshll.u32 2475754826, %v123
    %v130 = vshrl.u32 2131351028, %v124
    %v131 = vor.u32 %v129, %v130
    %v132 = vshll.u32 2131351028, %v123
    %v133 = vshrl.u32 2102212464, %v124
    %v134 = vor.u32 %v132, %v133
    %v135 = vshll.u32 2102212464, %v123
    %v136 = vshrl.u32 920167782, %v124
    %v137 = vor.u32 %v135, %v136
    %v138 = vshll.u32 920167782, %v123
    %v139 = vshrl.u32 1326507024, %v124
    %v140 = vor.u32 %v138, %v139
    %vm141 = vcmp.lt.s32.totalorder %v122, 1
    %vm142 = vcmp.lt.s32.totalorder %v122, 2
    %vm143 = vcmp.lt.s32.totalorder %v122, 3
    %vm144 = vcmp.lt.s32.totalorder %v122, 4
    %v145 = vsel %vm141, %v125, %v128
    %v146 = vsel %vm144, %v134, 2102212464
    %v147 = vsel %vm143, %v131, %v146
    %v148 = vsel %vm142, %v145, %v147
    %v149 = vsel %vm141, %v128, %v131
    %v150 = vsel %vm144, %v137, 920167782
    %v151 = vsel %vm143, %v134, %v150
    %v152 = vsel %vm142, %v149, %v151
    %v153 = vsel %vm141, %v131, %v134
    %v154 = vsel %vm144, %v140, 1326507024
    %v155 = vsel %vm143, %v137, %v154
    %v156 = vsel %vm142, %v153, %v155
    %v157 = vshll.u32 %v117, 8
    %v158 = vmul.u32.u64.compose %v157, %v156
    %v159 = vextract.low.u32 %v158
    %v160 = vextract.high.u32 %v158
    %v161 = vmul.u32.u64.compose %v157, %v152
    %v162 = vextract.low.u32 %v161
    %v163 = vextract.high.u32 %v161
    %v164 = vmul.u32 %v157, %v148
    %v165 = vadd.s32 %v160, %v162
    %vm166 = vc.u32 %v160, %v162
    %v167 = vadd.s32 %v163, 1
    %v168 = vsel %vm166, %v167, %v163
    %v169 = vadd.s32 %v164, %v168
    %v170 = vadd.s32 %v169, 536870912
    %v171 = vshrl.u32 %v170, 30
    %v172 = vshll.u32 %v171, 30
    %v173 = vsub.s32 %v169, %v172
    %vm174 = vcmp.lt.s32.totalorder %v173, 0
    %v175 = vsub.s32 0, %v173
    %v176 = vsel %vm174, %v175, %v173
    %v177 = vclz %v176
    %v178 = vsub.s32 %v177, 2
    %vm179 = vcmp.gt.s32.totalorder 0, %v178
    %v180 = vsel %vm179, 0, %v178
    %v181 = vsub.s32 32, %v180
    %v182 = vshll.u32 %v173, %v180
    %v183 = vshrl.u32 %v165, %v181
    %v184 = vor.u32 %v182, %v183
    %v185 = vsub.s32 4294967266, %v180
    %v186 = vadd.s32 %v185, 127
    %v187 = vshll.u32 %v186, 23
    %v188 = vor.u32 4788187, %v187
    %v189 = vand.u32 2147483647, %v188
    %v191 = vcvt.s32.f32 %v184
    %v192 = vmul.f32 %v191, %v189
    %v193 = vxor.u32 %v192, 2147483648
    %v194 = vsel %vm111, %v193, %v192
    %v195 = vsub.s32 4, %v171
    %v196 = vsel %vm111, %v195, %v171
    %v197 = vsel %vm110, %v93, %v194
    %v198 = vsel %vm110, 0, %v196
    %v199 = vcosq.f32.pop %v197
    %v200 = vsinq.f32.pop %v197
    %vm201 = vweird.f32 %v93
    %v202 = vadd.s32 %v198, 3
    %v203 = vand.u32 %v202, 3
    %vm204 = vcmp.lt.s32.totalorder %v203, 2
    %vm205 = vcmp.eq.s32.totalorder %v203, 0
    %v206 = vxor.u32 %v200, 2147483648
    %v207 = vsel %vm205, %v199, %v206
    %vm208 = vcmp.eq.s32.totalorder %v203, 2
    %v209 = vxor.u32 %v199, 2147483648
    %v210 = vsel %vm208, %v209, %v200
    %v211 = vsel %vm204, %v207, %v210
    %v212 = vsel %vm201, nan, %v211
    %v213 = vand.u32 2147483647, %v94
    %vm214 = vcmp.le.f32.partialorder %v213, 0.7853982
    %vm215 = vcmp.lt.s32.totalorder %v94, 0
    %v216 = vand.u32 %v94, 2139095040
    %v217 = vshrl.u32 %v216, 23
    %v218 = vsub.s32 %v217, 127
    %v219 = vand.u32 2147483647, %v94
    %v220 = vand.u32 %v219, 8388607
    %v221 = vor.u32 %v220, 8388608
    %v222 = vsub.s32 0, %v221
    %v223 = vadd.s32 %v218, 1
    %vm224 = vcmp.gt.s32.totalorder %v223, 0
    %v225 = vsel %vm224, %v223, 0
    %v226 = vshrl.u32 %v225, 5
    %v227 = vand.u32 %v225, 31
    %v228 = vsub.s32 32, %v227
    %v229 = vshrl.u32 683565275, %v228
    %v230 = vshll.u32 683565275, %v227
    %v231 = vshrl.u32 2475754826, %v228
    %v232 = vor.u32 %v230, %v231
    %v233 = vshll.u32 2475754826, %v227
    %v234 = vshrl.u32 2131351028, %v228
    %v235 = vor.u32 %v233, %v234
    %v236 = vshll.u32 2131351028, %v227
    %v237 = vshrl.u32 2102212464, %v228
    %v238 = vor.u32 %v236, %v237
    %v239 = vshll.u32 2102212464, %v227
    %v240 = vshrl.u32 920167782, %v228
    %v241 = vor.u32 %v239, %v240
    %v242 = vshll.u32 920167782, %v227
    %v243 = vshrl.u32 1326507024, %v228
    %v244 = vor.u32 %v242, %v243
    %vm245 = vcmp.lt.s32.totalorder %v226, 1
    %vm246 = vcmp.lt.s32.totalorder %v226, 2
    %vm247 = vcmp.lt.s32.totalorder %v226, 3
    %vm248 = vcmp.lt.s32.totalorder %v226, 4
    %v249 = vsel %vm245, %v229, %v232
    %v250 = vsel %vm248, %v238, 2102212464
    %v251 = vsel %vm247, %v235, %v250
    %v252 = vsel %vm246, %v249, %v251
    %v253 = vsel %vm245, %v232, %v235
    %v254 = vsel %vm248, %v241, 920167782
    %v255 = vsel %vm247, %v238, %v254
    %v256 = vsel %vm246, %v253, %v255
    %v257 = vsel %vm245, %v235, %v238
    %v258 = vsel %vm248, %v244, 1326507024
    %v259 = vsel %vm247, %v241, %v258
    %v260 = vsel %vm246, %v257, %v259
    %v261 = vshll.u32 %v221, 8
    %v262 = vmul.u32.u64.compose %v261, %v260
    %v263 = vextract.low.u32 %v262
    %v264 = vextract.high.u32 %v262
    %v265 = vmul.u32.u64.compose %v261, %v256
    %v266 = vextract.low.u32 %v265
    %v267 = vextract.high.u32 %v265
    %v268 = vmul.u32 %v261, %v252
    %v269 = vadd.s32 %v264, %v266
    %vm270 = vc.u32 %v264, %v266
    %v271 = vadd.s32 %v267, 1
    %v272 = vsel %vm270, %v271, %v267
    %v273 = vadd.s32 %v268, %v272
    %v274 = vadd.s32 %v273, 536870912
    %v275 = vshrl.u32 %v274, 30
    %v276 = vshll.u32 %v275, 30
    %v277 = vsub.s32 %v273, %v276
    %vm278 = vcmp.lt.s32.totalorder %v277, 0
    %v279 = vsub.s32 0, %v277
    %v280 = vsel %vm278, %v279, %v277
    %v281 = vclz %v280
    %v282 = vsub.s32 %v281, 2
    %vm283 = vcmp.gt.s32.totalorder 0, %v282
    %v284 = vsel %vm283, 0, %v282
    %v285 = vsub.s32 32, %v284
    %v286 = vshll.u32 %v277, %v284
    %v287 = vshrl.u32 %v269, %v285
    %v288 = vor.u32 %v286, %v287
    %v289 = vsub.s32 4294967266, %v284
    %v290 = vadd.s32 %v289, 127
    %v291 = vshll.u32 %v290, 23
    %v292 = vor.u32 4788187, %v291
    %v293 = vand.u32 2147483647, %v292
    %v295 = vcvt.s32.f32 %v288
    %v296 = vmul.f32 %v295, %v293
    %v297 = vxor.u32 %v296, 2147483648
    %v298 = vsel %vm215, %v297, %v296
    %v299 = vsub.s32 4, %v275
    %v300 = vsel %vm215, %v299, %v275
    %v301 = vsel %vm214, %v94, %v298
    %v302 = vsel %vm214, 0, %v300
    %v303 = vcosq.f32.pop %v301
    %v304 = vsinq.f32.pop %v301
    %vm305 = vweird.f32 %v94
    %v306 = vadd.s32 %v302, 3
    %v307 = vand.u32 %v306, 3
    %vm308 = vcmp.lt.s32.totalorder %v307, 2
    %vm309 = vcmp.eq.s32.totalorder %v307, 0
    %v310 = vxor.u32 %v304, 2147483648
    %v311 = vsel %vm309, %v303, %v310
    %vm312 = vcmp.eq.s32.totalorder %v307, 2
    %v313 = vxor.u32 %v303, 2147483648
    %v314 = vsel %vm312, %v313, %v304
    %v315 = vsel %vm308, %v311, %v314
    %v316 = vsel %vm305, nan, %v315
    %v317 = vadd.f32 %v107, %v212
    %v318 = vadd.f32 %v108, %v316
    %v319 = vpack.c.bf16 %v318, %v317
    %v320 = vld [vmem:[%s3] sm:$0xf]
    %v321 = vld [vmem:[%s3 + $0x4] sm:$0xf]
    %v322 = vld [vmem:[%s3 + $0x8] sm:$0xf]
    %v323 = vld [vmem:[%s3 + $0xc] sm:$0xf]
    %v324 = vld [vmem:[%s4] sm:$0x1]
    %v326 = vlaneseq
    %v327 = vshrl.u32 %v326, 7
    %v328 = vsub.s32 0, %v327
    %v329 = vrot.slane %v324, %v328
    %v335 = vunpack.c.l.b16 %v320
    %v336 = vunpack.c.l.b16 %v321
    %v337 = vunpack.c.l.b16 %v322
    %v338 = vunpack.c.l.b16 %v323
    %v339 = vpack.c.b16 %v336, %v335
    %v340 = vpack.c.b16 %v338, %v337
    %vm343 = vcmask 261120
    %v345 = vsel %vm343, %v319, 0
    %347 = vmatprep.subr.bf16.mxu0 0
    %348 = vmatpush1.bf16.msra.mxu0 0
    %349 = vmatprep.subr.bf16.mxu0 0
    %350 = vmatpush1.bf16.msra.mxu0 0
    %351 = vmatprep.subr.bf16.mxu0 0
    %352 = vmatpush1.bf16.msra.mxu0 0
    %353 = vmatprep.subr.bf16.mxu0 0
    %354 = vmatpush1.bf16.msra.mxu0 0
    %355 = vmatprep.subr.bf16.mxu0 0
    %356 = vmatpush1.bf16.msra.mxu0 0
    %357 = vmatprep.subr.bf16.mxu0 0
    %358 = vmatpush1.bf16.msra.mxu0 0
    %359 = vmatprep.subr.bf16.mxu0 0
    %360 = vmatpush1.bf16.msra.mxu0 %v340
    %361 = vmatprep.subr.bf16.mxu0 0
    %362 = vmatpush1.bf16.msra.mxu0 %v339
    %363 = vmatprep.subr.bf16.mxu0 0
    %364 = vmatpush2.bf16.msra.mxu0 0
    %365 = vmatprep.subr.bf16.mxu0 0
    %366 = vmatpush2.bf16.msra.mxu0 0
    %367 = vmatprep.subr.bf16.mxu0 0
    %368 = vmatpush2.bf16.msra.mxu0 0
    %369 = vmatprep.subr.bf16.mxu0 0
    %370 = vmatpush2.bf16.msra.mxu0 0
    %371 = vmatprep.subr.bf16.mxu0 0
    %372 = vmatpush2.bf16.msra.mxu0 0
    %373 = vmatprep.subr.bf16.mxu0 0
    %374 = vmatpush2.bf16.msra.mxu0 0
    %375 = vmatprep.subr.bf16.mxu0 0
    %376 = vmatpush2.bf16.msra.mxu0 0
    %377 = vmatprep.subr.bf16.mxu0 0
    %378 = vmatpush2.bf16.msra.mxu0 0
    %379 = vmatprep.mubr.bf16.mxu0 0
    %380 = vmatmul.mubr.bf16.gmra.mxu0 %v345
    %v381 = vpop.f32.mrf.mxu0
    %v382 = vadd.f32 %v329, %v381
    %v383 = vpop.f32.mrf.mxu0
    %v384 = vpop.f32.mrf.mxu0
    %v385 = vadd.f32 %v329, %v384
    %v386 = vpop.f32.mrf.mxu0
    %387 = vdwg.mxu0
    %v388 = vxor.u32 %v382, 2147483648
    %v389 = vxor.u32 %v385, 2147483648
    %v390 = vmul.f32 %v388, 1.442695
    %v391 = vpow.pop %v390
    %v392 = vmul.f32 %v389, 1.442695
    %v393 = vpow.pop %v392
    %v394 = vadd.f32 %v391, 1.0
    %v395 = vadd.f32 %v393, 1.0
    %v396 = vrcp.pop %v394
    %v397 = vmul.f32 1.0, %v396
    %v398 = vrcp.pop %v395
    %v399 = vmul.f32 1.0, %v398
    %v400 = vmul.f32 %v382, %v397
    %v401 = vmul.f32 %v385, %v399
    %v402 = vand.u32 2147483647, %v382
    %vm403 = vcmp.le.f32.partialorder %v402, 0.7853982
    %vm404 = vcmp.lt.s32.totalorder %v382, 0
    %v405 = vand.u32 %v382, 2139095040
    %v406 = vshrl.u32 %v405, 23
    %v407 = vsub.s32 %v406, 127
    %v408 = vand.u32 2147483647, %v382
    %v409 = vand.u32 %v408, 8388607
    %v410 = vor.u32 %v409, 8388608
    %v411 = vsub.s32 0, %v410
    %v412 = vadd.s32 %v407, 1
    %vm413 = vcmp.gt.s32.totalorder %v412, 0
    %v414 = vsel %vm413, %v412, 0
    %v415 = vshrl.u32 %v414, 5
    %v416 = vand.u32 %v414, 31
    %v417 = vsub.s32 32, %v416
    %v418 = vshrl.u32 683565275, %v417
    %v419 = vshll.u32 683565275, %v416
    %v420 = vshrl.u32 2475754826, %v417
    %v421 = vor.u32 %v419, %v420
    %v422 = vshll.u32 2475754826, %v416
    %v423 = vshrl.u32 2131351028, %v417
    %v424 = vor.u32 %v422, %v423
    %v425 = vshll.u32 2131351028, %v416
    %v426 = vshrl.u32 2102212464, %v417
    %v427 = vor.u32 %v425, %v426
    %v428 = vshll.u32 2102212464, %v416
    %v429 = vshrl.u32 920167782, %v417
    %v430 = vor.u32 %v428, %v429
    %v431 = vshll.u32 920167782, %v416
    %v432 = vshrl.u32 1326507024, %v417
    %v433 = vor.u32 %v431, %v432
    %vm434 = vcmp.lt.s32.totalorder %v415, 1
    %vm435 = vcmp.lt.s32.totalorder %v415, 2
    %vm436 = vcmp.lt.s32.totalorder %v415, 3
    %vm437 = vcmp.lt.s32.totalorder %v415, 4
    %v438 = vsel %vm434, %v418, %v421
    %v439 = vsel %vm437, %v427, 2102212464
    %v440 = vsel %vm436, %v424, %v439
    %v441 = vsel %vm435, %v438, %v440
    %v442 = vsel %vm434, %v421, %v424
    %v443 = vsel %vm437, %v430, 920167782
    %v444 = vsel %vm436, %v427, %v443
    %v445 = vsel %vm435, %v442, %v444
    %v446 = vsel %vm434, %v424, %v427
    %v447 = vsel %vm437, %v433, 1326507024
    %v448 = vsel %vm436, %v430, %v447
    %v449 = vsel %vm435, %v446, %v448
    %v450 = vshll.u32 %v410, 8
    %v451 = vmul.u32.u64.compose %v450, %v449
    %v452 = vextract.low.u32 %v451
    %v453 = vextract.high.u32 %v451
    %v454 = vmul.u32.u64.compose %v450, %v445
    %v455 = vextract.low.u32 %v454
    %v456 = vextract.high.u32 %v454
    %v457 = vmul.u32 %v450, %v441
    %v458 = vadd.s32 %v453, %v455
    %vm459 = vc.u32 %v453, %v455
    %v460 = vadd.s32 %v456, 1
    %v461 = vsel %vm459, %v460, %v456
    %v462 = vadd.s32 %v457, %v461
    %v463 = vadd.s32 %v462, 536870912
    %v464 = vshrl.u32 %v463, 30
    %v465 = vshll.u32 %v464, 30
    %v466 = vsub.s32 %v462, %v465
    %vm467 = vcmp.lt.s32.totalorder %v466, 0
    %v468 = vsub.s32 0, %v466
    %v469 = vsel %vm467, %v468, %v466
    %v470 = vclz %v469
    %v471 = vsub.s32 %v470, 2
    %vm472 = vcmp.gt.s32.totalorder 0, %v471
    %v473 = vsel %vm472, 0, %v471
    %v474 = vsub.s32 32, %v473
    %v475 = vshll.u32 %v466, %v473
    %v476 = vshrl.u32 %v458, %v474
    %v477 = vor.u32 %v475, %v476
    %v478 = vsub.s32 4294967266, %v473
    %v479 = vadd.s32 %v478, 127
    %v480 = vshll.u32 %v479, 23
    %v481 = vor.u32 4788187, %v480
    %v482 = vand.u32 2147483647, %v481
    %v484 = vcvt.s32.f32 %v477
    %v485 = vmul.f32 %v484, %v482
    %v486 = vxor.u32 %v485, 2147483648
    %v487 = vsel %vm404, %v486, %v485
    %v488 = vsub.s32 4, %v464
    %v489 = vsel %vm404, %v488, %v464
    %v490 = vsel %vm403, %v382, %v487
    %v491 = vsel %vm403, 0, %v489
    %v492 = vcosq.f32.pop %v490
    %v493 = vsinq.f32.pop %v490
    %vm494 = vweird.f32 %v382
    %v495 = vadd.s32 %v491, 3
    %v496 = vand.u32 %v495, 3
    %vm497 = vcmp.lt.s32.totalorder %v496, 2
    %vm498 = vcmp.eq.s32.totalorder %v496, 0
    %v499 = vxor.u32 %v493, 2147483648
    %v500 = vsel %vm498, %v492, %v499
    %vm501 = vcmp.eq.s32.totalorder %v496, 2
    %v502 = vxor.u32 %v492, 2147483648
    %v503 = vsel %vm501, %v502, %v493
    %v504 = vsel %vm497, %v500, %v503
    %v505 = vsel %vm494, nan, %v504
    %v506 = vand.u32 2147483647, %v385
    %vm507 = vcmp.le.f32.partialorder %v506, 0.7853982
    %vm508 = vcmp.lt.s32.totalorder %v385, 0
    %v509 = vand.u32 %v385, 2139095040
    %v510 = vshrl.u32 %v509, 23
    %v511 = vsub.s32 %v510, 127
    %v512 = vand.u32 2147483647, %v385
    %v513 = vand.u32 %v512, 8388607
    %v514 = vor.u32 %v513, 8388608
    %v515 = vsub.s32 0, %v514
    %v516 = vadd.s32 %v511, 1
    %vm517 = vcmp.gt.s32.totalorder %v516, 0
    %v518 = vsel %vm517, %v516, 0
    %v519 = vshrl.u32 %v518, 5
    %v520 = vand.u32 %v518, 31
    %v521 = vsub.s32 32, %v520
    %v522 = vshrl.u32 683565275, %v521
    %v523 = vshll.u32 683565275, %v520
    %v524 = vshrl.u32 2475754826, %v521
    %v525 = vor.u32 %v523, %v524
    %v526 = vshll.u32 2475754826, %v520
    %v527 = vshrl.u32 2131351028, %v521
    %v528 = vor.u32 %v526, %v527
    %v529 = vshll.u32 2131351028, %v520
    %v530 = vshrl.u32 2102212464, %v521
    %v531 = vor.u32 %v529, %v530
    %v532 = vshll.u32 2102212464, %v520
    %v533 = vshrl.u32 920167782, %v521
    %v534 = vor.u32 %v532, %v533
    %v535 = vshll.u32 920167782, %v520
    %v536 = vshrl.u32 1326507024, %v521
    %v537 = vor.u32 %v535, %v536
    %vm538 = vcmp.lt.s32.totalorder %v519, 1
    %vm539 = vcmp.lt.s32.totalorder %v519, 2
    %vm540 = vcmp.lt.s32.totalorder %v519, 3
    %vm541 = vcmp.lt.s32.totalorder %v519, 4
    %v542 = vsel %vm538, %v522, %v525
    %v543 = vsel %vm541, %v531, 2102212464
    %v544 = vsel %vm540, %v528, %v543
    %v545 = vsel %vm539, %v542, %v544
    %v546 = vsel %vm538, %v525, %v528
    %v547 = vsel %vm541, %v534, 920167782
    %v548 = vsel %vm540, %v531, %v547
    %v549 = vsel %vm539, %v546, %v548
    %v550 = vsel %vm538, %v528, %v531
    %v551 = vsel %vm541, %v537, 1326507024
    %v552 = vsel %vm540, %v534, %v551
    %v553 = vsel %vm539, %v550, %v552
    %v554 = vshll.u32 %v514, 8
    %v555 = vmul.u32.u64.compose %v554, %v553
    %v556 = vextract.low.u32 %v555
    %v557 = vextract.high.u32 %v555
    %v558 = vmul.u32.u64.compose %v554, %v549
    %v559 = vextract.low.u32 %v558
    %v560 = vextract.high.u32 %v558
    %v561 = vmul.u32 %v554, %v545
    %v562 = vadd.s32 %v557, %v559
    %vm563 = vc.u32 %v557, %v559
    %v564 = vadd.s32 %v560, 1
    %v565 = vsel %vm563, %v564, %v560
    %v566 = vadd.s32 %v561, %v565
    %v567 = vadd.s32 %v566, 536870912
    %v568 = vshrl.u32 %v567, 30
    %v569 = vshll.u32 %v568, 30
    %v570 = vsub.s32 %v566, %v569
    %vm571 = vcmp.lt.s32.totalorder %v570, 0
    %v572 = vsub.s32 0, %v570
    %v573 = vsel %vm571, %v572, %v570
    %v574 = vclz %v573
    %v575 = vsub.s32 %v574, 2
    %vm576 = vcmp.gt.s32.totalorder 0, %v575
    %v577 = vsel %vm576, 0, %v575
    %v578 = vsub.s32 32, %v577
    %v579 = vshll.u32 %v570, %v577
    %v580 = vshrl.u32 %v562, %v578
    %v581 = vor.u32 %v579, %v580
    %v582 = vsub.s32 4294967266, %v577
    %v583 = vadd.s32 %v582, 127
    %v584 = vshll.u32 %v583, 23
    %v585 = vor.u32 4788187, %v584
    %v586 = vand.u32 2147483647, %v585
    %v588 = vcvt.s32.f32 %v581
    %v589 = vmul.f32 %v588, %v586
    %v590 = vxor.u32 %v589, 2147483648
    %v591 = vsel %vm508, %v590, %v589
    %v592 = vsub.s32 4, %v568
    %v593 = vsel %vm508, %v592, %v568
    %v594 = vsel %vm507, %v385, %v591
    %v595 = vsel %vm507, 0, %v593
    %v596 = vcosq.f32.pop %v594
    %v597 = vsinq.f32.pop %v594
    %vm598 = vweird.f32 %v385
    %v599 = vadd.s32 %v595, 3
    %v600 = vand.u32 %v599, 3
    %vm601 = vcmp.lt.s32.totalorder %v600, 2
    %vm602 = vcmp.eq.s32.totalorder %v600, 0
    %v603 = vxor.u32 %v597, 2147483648
    %v604 = vsel %vm602, %v596, %v603
    %vm605 = vcmp.eq.s32.totalorder %v600, 2
    %v606 = vxor.u32 %v596, 2147483648
    %v607 = vsel %vm605, %v606, %v597
    %v608 = vsel %vm601, %v604, %v607
    %v609 = vsel %vm598, nan, %v608
    %v610 = vadd.f32 %v400, %v505
    %v611 = vadd.f32 %v401, %v609
    %v612 = vpack.c.bf16 %v611, %v610
    %v614 = vunpack.c.l.b16 %v612
    %v615 = vunpack.c.h.b16 %v612
    %v616 = vpack.c.b16 %v614, %v614
    %v617 = vpack.c.b16 %v615, %v615
    %vm620 = vcmask 257024
    %621 = vst.msk [vmem:[#allocation2] sm:$0xf] %vm620, %v616
    %622 = vst.msk [vmem:[#allocation2 + $0x4] sm:$0xf] %vm620, %v617
    %v623 = vld [vmem:[#allocation3] sm:$0xf]
    %v624 = vld [vmem:[#allocation3 + $0x4] sm:$0xf]
    %v625 = vld [vmem:[#allocation3 + $0x8] sm:$0xf]
    %v626 = vld [vmem:[#allocation3 + $0xc] sm:$0xf]
    %v627 = vld [vmem:[%s6] sm:$0x1]
    %v629 = vlaneseq
    %v630 = vshrl.u32 %v629, 7
    %v631 = vsub.s32 0, %v630
    %v632 = vrot.slane %v627, %v631
    %v638 = vunpack.c.l.b16 %v623
    %v639 = vunpack.c.l.b16 %v624
    %v640 = vunpack.c.l.b16 %v625
    %v641 = vunpack.c.l.b16 %v626
    %v642 = vpack.c.b16 %v639, %v638
    %v643 = vpack.c.b16 %v641, %v640
    %v647 = vsel %vm343, %v612, 0
    %649 = vmatprep.subr.bf16.mxu0 0
    %650 = vmatpush1.bf16.msra.mxu0 0
    %651 = vmatprep.subr.bf16.mxu0 0
    %652 = vmatpush1.bf16.msra.mxu0 0
    %653 = vmatprep.subr.bf16.mxu0 0
    %654 = vmatpush1.bf16.msra.mxu0 0
    %655 = vmatprep.subr.bf16.mxu0 0
    %656 = vmatpush1.bf16.msra.mxu0 0
    %657 = vmatprep.subr.bf16.mxu0 0
    %658 = vmatpush1.bf16.msra.mxu0 0
    %659 = vmatprep.subr.bf16.mxu0 0
    %660 = vmatpush1.bf16.msra.mxu0 0
    %661 = vmatprep.subr.bf16.mxu0 0
    %662 = vmatpush1.bf16.msra.mxu0 %v643
    %663 = vmatprep.subr.bf16.mxu0 0
    %664 = vmatpush1.bf16.msra.mxu0 %v642
    %665 = vmatprep.subr.bf16.mxu0 0
    %666 = vmatpush2.bf16.msra.mxu0 0
    %667 = vmatprep.subr.bf16.mxu0 0
    %668 = vmatpush2.bf16.msra.mxu0 0
    %669 = vmatprep.subr.bf16.mxu0 0
    %670 = vmatpush2.bf16.msra.mxu0 0
    %671 = vmatprep.subr.bf16.mxu0 0
    %672 = vmatpush2.bf16.msra.mxu0 0
    %673 = vmatprep.subr.bf16.mxu0 0
    %674 = vmatpush2.bf16.msra.mxu0 0
    %675 = vmatprep.subr.bf16.mxu0 0
    %676 = vmatpush2.bf16.msra.mxu0 0
    %677 = vmatprep.subr.bf16.mxu0 0
    %678 = vmatpush2.bf16.msra.mxu0 0
    %679 = vmatprep.subr.bf16.mxu0 0
    %680 = vmatpush2.bf16.msra.mxu0 0
    %681 = vmatprep.mubr.bf16.mxu0 0
    %682 = vmatmul.mubr.bf16.gmra.mxu0 %v647
    %v683 = vpop.f32.mrf.mxu0
    %v684 = vadd.f32 %v632, %v683
    %v685 = vpop.f32.mrf.mxu0
    %v686 = vpop.f32.mrf.mxu0
    %v687 = vadd.f32 %v632, %v686
    %v688 = vpop.f32.mrf.mxu0
    %689 = vdwg.mxu0
    %v690 = vxor.u32 %v684, 2147483648
    %v691 = vxor.u32 %v687, 2147483648
    %v692 = vmul.f32 %v690, 1.442695
    %v693 = vpow.pop %v692
    %v694 = vmul.f32 %v691, 1.442695
    %v695 = vpow.pop %v694
    %v696 = vadd.f32 %v693, 1.0
    %v697 = vadd.f32 %v695, 1.0
    %v698 = vrcp.pop %v696
    %v699 = vmul.f32 1.0, %v698
    %v700 = vrcp.pop %v697
    %v701 = vmul.f32 1.0, %v700
    %v702 = vmul.f32 %v684, %v699
    %v703 = vmul.f32 %v687, %v701
    %v704 = vand.u32 2147483647, %v684
    %vm705 = vcmp.le.f32.partialorder %v704, 0.7853982
    %vm706 = vcmp.lt.s32.totalorder %v684, 0
    %v707 = vand.u32 %v684, 2139095040
    %v708 = vshrl.u32 %v707, 23
    %v709 = vsub.s32 %v708, 127
    %v710 = vand.u32 2147483647, %v684
    %v711 = vand.u32 %v710, 8388607
    %v712 = vor.u32 %v711, 8388608
    %v713 = vsub.s32 0, %v712
    %v714 = vadd.s32 %v709, 1
    %vm715 = vcmp.gt.s32.totalorder %v714, 0
    %v716 = vsel %vm715, %v714, 0
    %v717 = vshrl.u32 %v716, 5
    %v718 = vand.u32 %v716, 31
    %v719 = vsub.s32 32, %v718
    %v720 = vshrl.u32 683565275, %v719
    %v721 = vshll.u32 683565275, %v718
    %v722 = vshrl.u32 2475754826, %v719
    %v723 = vor.u32 %v721, %v722
    %v724 = vshll.u32 2475754826, %v718
    %v725 = vshrl.u32 2131351028, %v719
    %v726 = vor.u32 %v724, %v725
    %v727 = vshll.u32 2131351028, %v718
    %v728 = vshrl.u32 2102212464, %v719
    %v729 = vor.u32 %v727, %v728
    %v730 = vshll.u32 2102212464, %v718
    %v731 = vshrl.u32 920167782, %v719
    %v732 = vor.u32 %v730, %v731
    %v733 = vshll.u32 920167782, %v718
    %v734 = vshrl.u32 1326507024, %v719
    %v735 = vor.u32 %v733, %v734
    %vm736 = vcmp.lt.s32.totalorder %v717, 1
    %vm737 = vcmp.lt.s32.totalorder %v717, 2
    %vm738 = vcmp.lt.s32.totalorder %v717, 3
    %vm739 = vcmp.lt.s32.totalorder %v717, 4
    %v740 = vsel %vm736, %v720, %v723
    %v741 = vsel %vm739, %v729, 2102212464
    %v742 = vsel %vm738, %v726, %v741
    %v743 = vsel %vm737, %v740, %v742
    %v744 = vsel %vm736, %v723, %v726
    %v745 = vsel %vm739, %v732, 920167782
    %v746 = vsel %vm738, %v729, %v745
    %v747 = vsel %vm737, %v744, %v746
    %v748 = vsel %vm736, %v726, %v729
    %v749 = vsel %vm739, %v735, 1326507024
    %v750 = vsel %vm738, %v732, %v749
    %v751 = vsel %vm737, %v748, %v750
    %v752 = vshll.u32 %v712, 8
    %v753 = vmul.u32.u64.compose %v752, %v751
    %v754 = vextract.low.u32 %v753
    %v755 = vextract.high.u32 %v753
    %v756 = vmul.u32.u64.compose %v752, %v747
    %v757 = vextract.low.u32 %v756
    %v758 = vextract.high.u32 %v756
    %v759 = vmul.u32 %v752, %v743
    %v760 = vadd.s32 %v755, %v757
    %vm761 = vc.u32 %v755, %v757
    %v762 = vadd.s32 %v758, 1
    %v763 = vsel %vm761, %v762, %v758
    %v764 = vadd.s32 %v759, %v763
    %v765 = vadd.s32 %v764, 536870912
    %v766 = vshrl.u32 %v765, 30
    %v767 = vshll.u32 %v766, 30
    %v768 = vsub.s32 %v764, %v767
    %vm769 = vcmp.lt.s32.totalorder %v768, 0
    %v770 = vsub.s32 0, %v768
    %v771 = vsel %vm769, %v770, %v768
    %v772 = vclz %v771
    %v773 = vsub.s32 %v772, 2
    %vm774 = vcmp.gt.s32.totalorder 0, %v773
    %v775 = vsel %vm774, 0, %v773
    %v776 = vsub.s32 32, %v775
    %v777 = vshll.u32 %v768, %v775
    %v778 = vshrl.u32 %v760, %v776
    %v779 = vor.u32 %v777, %v778
    %v780 = vsub.s32 4294967266, %v775
    %v781 = vadd.s32 %v780, 127
    %v782 = vshll.u32 %v781, 23
    %v783 = vor.u32 4788187, %v782
    %v784 = vand.u32 2147483647, %v783
    %v786 = vcvt.s32.f32 %v779
    %v787 = vmul.f32 %v786, %v784
    %v788 = vxor.u32 %v787, 2147483648
    %v789 = vsel %vm706, %v788, %v787
    %v790 = vsub.s32 4, %v766
    %v791 = vsel %vm706, %v790, %v766
    %v792 = vsel %vm705, %v684, %v789
    %v793 = vsel %vm705, 0, %v791
    %v794 = vcosq.f32.pop %v792
    %v795 = vsinq.f32.pop %v792
    %vm796 = vweird.f32 %v684
    %v797 = vadd.s32 %v793, 3
    %v798 = vand.u32 %v797, 3
    %vm799 = vcmp.lt.s32.totalorder %v798, 2
    %vm800 = vcmp.eq.s32.totalorder %v798, 0
    %v801 = vxor.u32 %v795, 2147483648
    %v802 = vsel %vm800, %v794, %v801
    %vm803 = vcmp.eq.s32.totalorder %v798, 2
    %v804 = vxor.u32 %v794, 2147483648
    %v805 = vsel %vm803, %v804, %v795
    %v806 = vsel %vm799, %v802, %v805
    %v807 = vsel %vm796, nan, %v806
    %v808 = vand.u32 2147483647, %v687
    %vm809 = vcmp.le.f32.partialorder %v808, 0.7853982
    %vm810 = vcmp.lt.s32.totalorder %v687, 0
    %v811 = vand.u32 %v687, 2139095040
    %v812 = vshrl.u32 %v811, 23
    %v813 = vsub.s32 %v812, 127
    %v814 = vand.u32 2147483647, %v687
    %v815 = vand.u32 %v814, 8388607
    %v816 = vor.u32 %v815, 8388608
    %v817 = vsub.s32 0, %v816
    %v818 = vadd.s32 %v813, 1
    %vm819 = vcmp.gt.s32.totalorder %v818, 0
    %v820 = vsel %vm819, %v818, 0
    %v821 = vshrl.u32 %v820, 5
    %v822 = vand.u32 %v820, 31
    %v823 = vsub.s32 32, %v822
    %v824 = vshrl.u32 683565275, %v823
    %v825 = vshll.u32 683565275, %v822
    %v826 = vshrl.u32 2475754826, %v823
    %v827 = vor.u32 %v825, %v826
    %v828 = vshll.u32 2475754826, %v822
    %v829 = vshrl.u32 2131351028, %v823
    %v830 = vor.u32 %v828, %v829
    %v831 = vshll.u32 2131351028, %v822
    %v832 = vshrl.u32 2102212464, %v823
    %v833 = vor.u32 %v831, %v832
    %v834 = vshll.u32 2102212464, %v822
    %v835 = vshrl.u32 920167782, %v823
    %v836 = vor.u32 %v834, %v835
    %v837 = vshll.u32 920167782, %v822
    %v838 = vshrl.u32 1326507024, %v823
    %v839 = vor.u32 %v837, %v838
    %vm840 = vcmp.lt.s32.totalorder %v821, 1
    %vm841 = vcmp.lt.s32.totalorder %v821, 2
    %vm842 = vcmp.lt.s32.totalorder %v821, 3
    %vm843 = vcmp.lt.s32.totalorder %v821, 4
    %v844 = vsel %vm840, %v824, %v827
    %v845 = vsel %vm843, %v833, 2102212464
    %v846 = vsel %vm842, %v830, %v845
    %v847 = vsel %vm841, %v844, %v846
    %v848 = vsel %vm840, %v827, %v830
    %v849 = vsel %vm843, %v836, 920167782
    %v850 = vsel %vm842, %v833, %v849
    %v851 = vsel %vm841, %v848, %v850
    %v852 = vsel %vm840, %v830, %v833
    %v853 = vsel %vm843, %v839, 1326507024
    %v854 = vsel %vm842, %v836, %v853
    %v855 = vsel %vm841, %v852, %v854
    %v856 = vshll.u32 %v816, 8
    %v857 = vmul.u32.u64.compose %v856, %v855
    %v858 = vextract.low.u32 %v857
    %v859 = vextract.high.u32 %v857
    %v860 = vmul.u32.u64.compose %v856, %v851
    %v861 = vextract.low.u32 %v860
    %v862 = vextract.high.u32 %v860
    %v863 = vmul.u32 %v856, %v847
    %v864 = vadd.s32 %v859, %v861
    %vm865 = vc.u32 %v859, %v861
    %v866 = vadd.s32 %v862, 1
    %v867 = vsel %vm865, %v866, %v862
    %v868 = vadd.s32 %v863, %v867
    %v869 = vadd.s32 %v868, 536870912
    %v870 = vshrl.u32 %v869, 30
    %v871 = vshll.u32 %v870, 30
    %v872 = vsub.s32 %v868, %v871
    %vm873 = vcmp.lt.s32.totalorder %v872, 0
    %v874 = vsub.s32 0, %v872
    %v875 = vsel %vm873, %v874, %v872
    %v876 = vclz %v875
    %v877 = vsub.s32 %v876, 2
    %vm878 = vcmp.gt.s32.totalorder 0, %v877
    %v879 = vsel %vm878, 0, %v877
    %v880 = vsub.s32 32, %v879
    %v881 = vshll.u32 %v872, %v879
    %v882 = vshrl.u32 %v864, %v880
    %v883 = vor.u32 %v881, %v882
    %v884 = vsub.s32 4294967266, %v879
    %v885 = vadd.s32 %v884, 127
    %v886 = vshll.u32 %v885, 23
    %v887 = vor.u32 4788187, %v886
    %v888 = vand.u32 2147483647, %v887
    %v890 = vcvt.s32.f32 %v883
    %v891 = vmul.f32 %v890, %v888
    %v892 = vxor.u32 %v891, 2147483648
    %v893 = vsel %vm810, %v892, %v891
    %v894 = vsub.s32 4, %v870
    %v895 = vsel %vm810, %v894, %v870
    %v896 = vsel %vm809, %v687, %v893
    %v897 = vsel %vm809, 0, %v895
    %v898 = vcosq.f32.pop %v896
    %v899 = vsinq.f32.pop %v896
    %vm900 = vweird.f32 %v687
    %v901 = vadd.s32 %v897, 3
    %v902 = vand.u32 %v901, 3
    %vm903 = vcmp.lt.s32.totalorder %v902, 2
    %vm904 = vcmp.eq.s32.totalorder %v902, 0
    %v905 = vxor.u32 %v899, 2147483648
    %v906 = vsel %vm904, %v898, %v905
    %vm907 = vcmp.eq.s32.totalorder %v902, 2
    %v908 = vxor.u32 %v898, 2147483648
    %v909 = vsel %vm907, %v908, %v899
    %v910 = vsel %vm903, %v906, %v909
    %v911 = vsel %vm900, nan, %v910
    %v912 = vadd.f32 %v702, %v807
    %v913 = vadd.f32 %v703, %v911
    %v914 = vpack.c.bf16 %v913, %v912
    %v916 = vunpack.c.l.b16 %v914
    %v917 = vunpack.c.h.b16 %v914
    %v918 = vpack.c.b16 %v916, %v916
    %v919 = vpack.c.b16 %v917, %v917
    %920 = vrot.lane.b32.xlu0 %v918, 32
    %v921 = vpop.permute.xlu0 %920
    %922 = vrot.lane.b32.xlu0 %v919, 32
    %v923 = vpop.permute.xlu0 %922
    %vm926 = vcmask 519424
    %927 = vst.msk [vmem:[#allocation2] sm:$0xf] %vm926, %v921
    %928 = vst.msk [vmem:[#allocation2 + $0x4] sm:$0xf] %vm926, %v923
    %v929 = vld [vmem:[%s7] sm:$0x7]
    %v930 = vld [vmem:[#allocation2] sm:$0xf]
    %v931 = vld [vmem:[#allocation2 + $0x4] sm:$0xf]
    %v932 = vld [vmem:[%s8] sm:$0x3f]
    %934 = vset.pattern.permute.xlu0 0
    %935 = vperm.xlu0 %934, %v932
    %v936 = vpop.permute.xlu0 %935
    %v940 = vunpack.c.l.b16 %v930
    %v941 = vunpack.c.l.b16 %v931
    %v942 = vpack.c.b16 %v941, %v940
    %vm943 = vcmask 523264
    %v945 = vsel %vm943, %v929, 0
    %v948 = vsel %vm943, %v942, 0
    %950 = vmatprep.subr.bf16.mxu0 0
    %951 = vmatpush1.bf16.xpose.msra.mxu0 0
    %952 = vmatprep.subr.bf16.mxu0 0
    %953 = vmatpush1.bf16.xpose.msra.mxu0 0
    %954 = vmatprep.subr.bf16.mxu0 0
    %955 = vmatpush1.bf16.xpose.msra.mxu0 0
    %956 = vmatprep.subr.bf16.mxu0 0
    %957 = vmatpush1.bf16.xpose.msra.mxu0 0
    %958 = vmatprep.subr.bf16.mxu0 0
    %959 = vmatpush1.bf16.xpose.msra.mxu0 0
    %960 = vmatprep.subr.bf16.mxu0 0
    %961 = vmatpush1.bf16.xpose.msra.mxu0 0
    %962 = vmatprep.subr.bf16.mxu0 0
    %963 = vmatpush1.bf16.xpose.msra.mxu0 0
    %964 = vmatprep.subr.bf16.mxu0 0
    %965 = vmatpush1.bf16.xpose.msra.mxu0 %v948
    %966 = vmatprep.subr.bf16.mxu0 0
    %967 = vmatpush2.bf16.xpose.msra.mxu0 0
    %968 = vmatprep.subr.bf16.mxu0 0
    %969 = vmatpush2.bf16.xpose.msra.mxu0 0
    %970 = vmatprep.subr.bf16.mxu0 0
    %971 = vmatpush2.bf16.xpose.msra.mxu0 0
    %972 = vmatprep.subr.bf16.mxu0 0
    %973 = vmatpush2.bf16.xpose.msra.mxu0 0
    %974 = vmatprep.subr.bf16.mxu0 0
    %975 = vmatpush2.bf16.xpose.msra.mxu0 0
    %976 = vmatprep.subr.bf16.mxu0 0
    %977 = vmatpush2.bf16.xpose.msra.mxu0 0
    %978 = vmatprep.subr.bf16.mxu0 0
    %979 = vmatpush2.bf16.xpose.msra.mxu0 0
    %980 = vmatprep.subr.bf16.mxu0 0
    %981 = vmatpush2.bf16.xpose.msra.mxu0 0
    %982 = vmatprep.mubr.bf16.mxu0 0
    %983 = vmatmul.mubr.bf16.gmra.mxu0 %v945
    %v984 = vpop.f32.mrf.mxu0
    %v985 = vadd.f32 %v936, %v984
    %v986 = vpop.f32.mrf.mxu0
    %v987 = vpop.f32.mrf.mxu0
    %v988 = vpop.f32.mrf.mxu0
    %989 = vdwg.mxu0
    %vm990 = vcmask 128000
    %991 = vst.msk [vmem:[#allocation6] sm:$0x3f] %vm990, %v985
    // Predicated region
    $region42: #{tpu_custom_call.1} parent=1 // pred_check
      _
    $region43: #{tpu_custom_call.1} parent=1 // pred_check_branch
      %993 = sbr.rel (0) target = $region45
    $region44: #{tpu_custom_call.1} parent=1 // pred_region
      %s995 = ssub.s32 128, 128
      %996 = vsyncadd [#allocation5], %s995
      %s998 = sshll.u32 [#allocation6], 4
      %s999 = int_to_ptr.vmem [resolvable:$true] %s998
      %1001 = dma.vmem_to_hbm [thread:$0]  %s999, 128, %s9, [#allocation5]
    $region45: #{tpu_custom_call.1} parent=1 // pred_fallthru
      _
    // Predicated region
    $region46: #{tpu_custom_call.1} parent=1 // pred_check
      _
    $region47: #{tpu_custom_call.1} parent=1 // pred_check_branch
      %1003 = sbr.rel (0) target = $region49
    $region48: #{tpu_custom_call.1} parent=1 // pred_region
      %1004 = dma.done [#allocation5], 128
    $region49: #{tpu_custom_call.1} parent=1 // pred_fallthru
      _
    %1005 = vsyncpa [#allocation4], 1
    %1006 = vsyncpa [#allocation5], 1

</llo_original>
